<compile_context>
chip_gen: v7x
topology: tpu7x:2x2x1
jax: 0.10.0
libtpu: 0.0.40
codegen_flags: <defaults>
</compile_context>

<pallas_src>
import functools

import jax
import jax.numpy as jnp
from jax.experimental import pallas as pl
from jax.experimental.pallas import tpu as pltpu


def _round_up(x, m):
    return (x + m - 1) // m * m


def _compiler_params(semantics, block_byte_sizes):
    # Double-buffered blocks + headroom, capped so the request is valid on
    # v7x (64 MiB physical VMEM) as well as v5e/v6e (128 MiB).
    working = 2 * sum(block_byte_sizes)
    limit = int(min(48 * 1024 * 1024, max(16 * 1024 * 1024, 4 * working)))
    return pltpu.CompilerParams(dimension_semantics=semantics,
                                vmem_limit_bytes=limit)


# ----------------------------------------------------------------------------
# Pallas kernels
# ----------------------------------------------------------------------------
def _sage_transform_kernel(x_ref, wr_ref, wn_ref, b_ref, hroot_ref, xw_ref):
    """Per-node transforms: h_root = x @ W_root + b (f32), xw = x @ W_neigh (bf16)."""
    x = x_ref[...].astype(jnp.bfloat16)
    hroot_ref[...] = (jnp.dot(x, wr_ref[...],
                              preferred_element_type=jnp.float32)
                      + b_ref[...])
    xw_ref[...] = jnp.dot(x, wn_ref[...],
                          preferred_element_type=jnp.float32
                          ).astype(jnp.bfloat16)


def _sage_aggregate_kernel(a_ref, xw_ref, hroot_ref, out_ref, acc_ref, *,
                           activation, n_valid):
    """out[i-tile] = act( h_root[i] + sum_k A[i,k] @ xw[k] )."""
    k = pl.program_id(1)

    @pl.when(k == 0)
    def _():
        # Seed the accumulator with the root/bias term (saves the extra add
        # at finalize; hroot's block index is constant over k so it is only
        # DMA'd once per row tile).
        acc_ref[...] = hroot_ref[...]

    acc_ref[...] += jnp.dot(a_ref[...], xw_ref[...],
                            preferred_element_type=jnp.float32)

    @pl.when(k == pl.num_programs(1) - 1)
    def _():
        h = acc_ref[...]
        if activation == "relu":
            h = jnp.maximum(h, 0.0)
        elif activation == "log_softmax":
            # Mask lanes beyond the real class count (classes are zero-padded
            # to a 128-lane-dense output).
            lane = jax.lax.broadcasted_iota(jnp.int32, h.shape, 1)
            valid = lane < n_valid
            hm = jnp.where(valid, h, -jnp.inf)
            m = jnp.max(hm, axis=1, keepdims=True)
            s = jnp.sum(jnp.where(valid, jnp.exp(h - m), 0.0),
                        axis=1, keepdims=True)
            h = h - (m + jnp.log(s))
        out_ref[...] = h.astype(out_ref.dtype)


# ----------------------------------------------------------------------------
# One SAGEConv layer = transform + aggregate pallas_calls
# ----------------------------------------------------------------------------
def sage_layer(x, a_bf16, w_root, w_neigh, bias, *, activation, n_valid,
               out_dtype, block_rows, block_k):
    n_p, f_p = x.shape
    h_p = w_root.shape[1]

    # ---- pass 1: per-node feature transforms (row-tiled) -------------------
    t_blocks = (block_rows * f_p * 2, 2 * f_p * h_p * 2, h_p * 4,
                block_rows * h_p * 4, block_rows * h_p * 2)
    h_root, xw = pl.pallas_call(
        _sage_transform_kernel,
        out_shape=(jax.ShapeDtypeStruct((n_p, h_p), jnp.float32),
                   jax.ShapeDtypeStruct((n_p, h_p), jnp.bfloat16)),
        grid=(n_p // block_rows,),
        in_specs=[pl.BlockSpec((block_rows, f_p), lambda i: (i, 0)),
                  pl.BlockSpec((f_p, h_p), lambda i: (0, 0)),
                  pl.BlockSpec((f_p, h_p), lambda i: (0, 0)),
                  pl.BlockSpec((1, h_p), lambda i: (0, 0))],
        out_specs=(pl.BlockSpec((block_rows, h_p), lambda i: (i, 0)),
                   pl.BlockSpec((block_rows, h_p), lambda i: (i, 0))),
        compiler_params=_compiler_params(("parallel",), t_blocks),
        cost_estimate=pl.CostEstimate(
            flops=4 * n_p * f_p * h_p,
            transcendentals=0,
            bytes_accessed=n_p * f_p * 2 + 2 * f_p * h_p * 2 + n_p * h_p * 6),
    )(x, w_root, w_neigh, bias)

    # ---- pass 2: mean aggregation + root term + activation ------------------
    n_row_tiles = n_p // block_rows
    n_k_tiles = n_p // block_k
    a_blocks = (block_rows * block_k * 2, block_k * h_p * 2,
                block_rows * h_p * 4, block_rows * h_p * 4,
                block_rows * h_p * 4)
    kernel = functools.partial(_sage_aggregate_kernel,
                               activation=activation, n_valid=n_valid)
    out = pl.pallas_call(
        kernel,
        out_shape=jax.ShapeDtypeStruct((n_p, h_p), out_dtype),
        grid=(n_row_tiles, n_k_tiles),
        in_specs=[pl.BlockSpec((block_rows, block_k), lambda i, k: (i, k)),
                  pl.BlockSpec((block_k, h_p), lambda i, k: (k, 0)),
                  pl.BlockSpec((block_rows, h_p), lambda i, k: (i, 0))],
        out_specs=pl.BlockSpec((block_rows, h_p), lambda i, k: (i, 0)),
        scratch_shapes=[pltpu.VMEM((block_rows, h_p), jnp.float32)],
        compiler_params=_compiler_params(("parallel", "arbitrary"), a_blocks),
        cost_estimate=pl.CostEstimate(
            flops=2 * n_p * n_p * h_p,
            transcendentals=n_p * h_p if activation == "log_softmax" else 0,
            bytes_accessed=(n_p * n_p * 2 + n_row_tiles * n_p * h_p * 2
                            + n_p * h_p * 4
                            + n_p * h_p * jnp.dtype(out_dtype).itemsize)),
    )(a_bf16, xw, h_root)
    return out


# ----------------------------------------------------------------------------
# Glue: dense normalized adjacency + parameter init + full forward
# ----------------------------------------------------------------------------
def build_norm_adj(edge_index, num_nodes):
    """A[i, j] = (#edges j->i) / deg_in(i).  Multi-edges are counted (matches
    PyG mean aggregation semantics)."""
    src, dst = edge_index[0], edge_index[1]
    a = jnp.zeros((num_nodes, num_nodes), jnp.float32)
    a = a.at[dst, src].add(1.0)
    deg = a.sum(axis=1, keepdims=True)
    return a / jnp.where(deg > 0, deg, 1.0)


def init_sage_params(key, f_in, f_out):
    k1, k2, k3 = jax.random.split(key, 3)
    scale = 1.0 / jnp.sqrt(jnp.float32(f_in))
    w_root = jax.random.uniform(k1, (f_in, f_out), jnp.float32, -scale, scale)
    w_neigh = jax.random.uniform(k2, (f_in, f_out), jnp.float32, -scale, scale)
    bias = jax.random.uniform(k3, (f_out,), jnp.float32, -scale, scale)
    return (w_root, w_neigh, bias)


def init_graphsage_params(key, num_features, hidden, num_classes, K):
    keys = jax.random.split(key, K)
    return {
        "conv1": init_sage_params(keys[0], num_features, hidden),
        "gcs": [init_sage_params(keys[1 + i], hidden, hidden)
                for i in range(K - 2)],
        "conv2": init_sage_params(keys[K - 1], hidden, num_classes),
    }


def _pad_weights(w_root, w_neigh, bias, f_in_p, f_out_p):
    """Zero-pad to lane-dense (128-multiple) shapes; weights pre-cast to bf16."""
    f_in, f_out = w_root.shape
    wr = jnp.zeros((f_in_p, f_out_p), jnp.float32).at[:f_in, :f_out].set(w_root)
    wn = jnp.zeros((f_in_p, f_out_p), jnp.float32).at[:f_in, :f_out].set(w_neigh)
    b = jnp.zeros((1, f_out_p), jnp.float32).at[0, :f_out].set(bias)
    return wr.astype(jnp.bfloat16), wn.astype(jnp.bfloat16), b


@functools.partial(jax.jit, static_argnums=(3,), static_argnames=("block",))
def graphsage_forward(x, edge_index, params, K, *, block=None):
    n, f_in = x.shape
    hidden = params["conv1"][0].shape[1]
    n_classes = params["conv2"][0].shape[1]

    if block is None:
        block = min(512, _round_up(n, 128))   # 128-aligned (v5e MXU too)
    n_p = _round_up(n, block)
    f_p = _round_up(f_in, 128)
    h_p = _round_up(hidden, 128)
    c_p = _round_up(n_classes, 128)

    # Dense row-normalized adjacency, padded & cast to bf16 ONCE and reused by
    # every layer (only one bf16 copy lives in HBM for the whole forward).
    # TODO(synk): for large graphs replace the dense A with a CSR scalar-prefetch
    # gather path (PrefetchScalarGridSpec + row DMAs); dense A is O(N^2).
    a = build_norm_adj(edge_index, n)
    a_p = jnp.zeros((n_p, n_p), jnp.float32).at[:n, :n].set(a)
    a_p = a_p.astype(jnp.bfloat16)

    # Node features padded and pre-cast to bf16 (same rounding the MXU would
    # apply anyway; halves the x HBM read of the transform pass).
    x_p = (jnp.zeros((n_p, f_p), jnp.float32).at[:n, :f_in].set(x)
           .astype(jnp.bfloat16))

    h = sage_layer(x_p, a_p, *_pad_weights(*params["conv1"], f_p, h_p),
                   activation="relu", n_valid=hidden, out_dtype=jnp.bfloat16,
                   block_rows=block, block_k=block)
    # TODO(synk): F.dropout(x, training=self.training) — inference mode, identity.
    for i in range(K - 2):
        h = sage_layer(h, a_p, *_pad_weights(*params["gcs"][i], h_p, h_p),
                       activation="relu", n_valid=hidden,
                       out_dtype=jnp.bfloat16,
                       block_rows=block, block_k=block)
    out = sage_layer(h, a_p, *_pad_weights(*params["conv2"], h_p, c_p),
                     activation="log_softmax", n_valid=n_classes,
                     out_dtype=jnp.float32,
                     block_rows=block, block_k=block)
    return out[:n, :n_classes]


def reference_forward(x, edge_index, params, K):
    """Pure-JAX f32 reference with identical semantics (for validation)."""
    a = build_norm_adj(edge_index, x.shape[0])

    def layer(h, p):
        w_root, w_neigh, b = p
        return h @ w_root + b + a @ (h @ w_neigh)

    h = jax.nn.relu(layer(x, params["conv1"]))
    for i in range(K - 2):
        h = jax.nn.relu(layer(h, params["gcs"][i]))
    return jax.nn.log_softmax(layer(h, params["conv2"]), axis=1)


# ----------------------------------------------------------------------------
if __name__ == "__main__":
    key = jax.random.PRNGKey(0)
    k_x, k_e, k_p = jax.random.split(key, 3)

    # Small synthetic graph/dataset consistent with the module's forward.
    N, F_IN, HIDDEN, N_CLASSES, K = 256, 96, 32, 8, 3
    N_EDGES = 2048

    x = jax.random.normal(k_x, (N, F_IN), jnp.float32)
    edge_index = jax.random.randint(k_e, (2, N_EDGES), 0, N, jnp.int32)
    params = init_graphsage_params(k_p, F_IN, HIDDEN, N_CLASSES, K)

    # block=128 gives a 2x2 aggregation grid at this size, exercising the
    # accumulator / pl.when init-finalize and the parallel row axis.
    out = graphsage_forward(x, edge_index, params, K, block=128)
    out = jax.block_until_ready(out)

    assert out.shape == (N, N_CLASSES)
    # rows of log_softmax must sum (in prob space) to ~1
    assert jnp.allclose(jnp.exp(out).sum(axis=1), 1.0, atol=1e-3)
    # match the pure-JAX f32 reference (kernel feeds bf16 to the MXU,
    # accumulates in f32).
    ref = reference_forward(x, edge_index, params, K)
    max_err = float(jnp.max(jnp.abs(out - ref)))
    assert max_err < 1e-1, max_err
    print("KERNEL_OK")
</pallas_src>

<mosaic_0001>
module attributes {stable_mosaic.version = 11 : i64} {
  func.func private @main(%arg0: i32) attributes {dimension_semantics = [#tpu.dimension_semantics<core_parallel>], iteration_bounds = array<i64: 2>, tpu.core_type = #tpu.core_type<sc_scalar_subcore>, window_params = []} {
    return
  }
}

module attributes {stable_mosaic.version = 11 : i64} {
  func.func private @main(%arg0: i32) attributes {dimension_semantics = [#tpu.dimension_semantics<core_parallel>], iteration_bounds = array<i64: 2>, tpu.core_type = #tpu.core_type<sc_scalar_subcore>, window_params = []} {
    return
  }
}

module attributes {stable_mosaic.version = 11 : i64} {
  func.func @_sage_transform_kernel(%arg0: i32, %arg1: memref<128x128xbf16, #tpu.memory_space<vmem>>, %arg2: memref<128x128xbf16, #tpu.memory_space<vmem>>, %arg3: memref<128x128xbf16, #tpu.memory_space<vmem>>, %arg4: memref<1x128xf32, #tpu.memory_space<vmem>>, %arg5: memref<128x128xf32, #tpu.memory_space<vmem>>, %arg6: memref<128x128xbf16, #tpu.memory_space<vmem>>) attributes {dimension_semantics = [#tpu.dimension_semantics<parallel>], iteration_bounds = array<i64: 2>, scalar_prefetch = 0 : i64, scratch_operands = 0 : i64, tpu.core_type = #tpu.core_type<tc>, window_params = [{transform_indices = @transform_0, window_bounds = array<i64: 128, 128>}, {pipeline_mode = #tpu.pipeline_mode<synchronous>, transform_indices = @transform_1, window_bounds = array<i64: 128, 128>}, {pipeline_mode = #tpu.pipeline_mode<synchronous>, transform_indices = @transform_2, window_bounds = array<i64: 128, 128>}, {pipeline_mode = #tpu.pipeline_mode<synchronous>, transform_indices = @transform_3, window_bounds = array<i64: 1, 128>}, {transform_indices = @transform_4, window_bounds = array<i64: 128, 128>}, {transform_indices = @transform_5, window_bounds = array<i64: 128, 128>}]} {
    %c0 = arith.constant 0 : index
    %c0_0 = arith.constant 0 : index
    %0 = vector.load %arg1[%c0, %c0_0] : memref<128x128xbf16, #tpu.memory_space<vmem>>, vector<128x128xbf16>
    %c0_1 = arith.constant 0 : index
    %c0_2 = arith.constant 0 : index
    %1 = vector.load %arg2[%c0_1, %c0_2] : memref<128x128xbf16, #tpu.memory_space<vmem>>, vector<128x128xbf16>
    %cst = arith.constant dense<0.000000e+00> : vector<128x128xf32>
    %2 = tpu.matmul %0, %1, %cst {dimension_numbers = #tpu.dot_dimension_numbers<[1], [0], [0], [1], [0, 0, 1, 1], [], []>} : vector<128x128xbf16>, vector<128x128xbf16>, vector<128x128xf32> -> vector<128x128xf32>
    %c0_3 = arith.constant 0 : index
    %c0_4 = arith.constant 0 : index
    %3 = vector.load %arg4[%c0_3, %c0_4] : memref<1x128xf32, #tpu.memory_space<vmem>>, vector<1x128xf32>
    %4 = vector.broadcast %3 : vector<1x128xf32> to vector<128x128xf32>
    %5 = arith.addf %2, %4 : vector<128x128xf32>
    %c0_5 = arith.constant 0 : index
    %c0_6 = arith.constant 0 : index
    %6 = vector.load %arg5[%c0_5, %c0_6] : memref<128x128xf32, #tpu.memory_space<vmem>>, vector<128x128xf32>
    tpu.vector_store %arg5[%c0_5, %c0_6], %5 {strides = array<i32>} : memref<128x128xf32, #tpu.memory_space<vmem>>, vector<128x128xf32>,
    %c0_7 = arith.constant 0 : index
    %c0_8 = arith.constant 0 : index
    %7 = vector.load %arg3[%c0_7, %c0_8] : memref<128x128xbf16, #tpu.memory_space<vmem>>, vector<128x128xbf16>
    %cst_9 = arith.constant dense<0.000000e+00> : vector<128x128xf32>
    %8 = tpu.matmul %0, %7, %cst_9 {dimension_numbers = #tpu.dot_dimension_numbers<[1], [0], [0], [1], [0, 0, 1, 1], [], []>} : vector<128x128xbf16>, vector<128x128xbf16>, vector<128x128xf32> -> vector<128x128xf32>
    %9 = arith.truncf %8 : vector<128x128xf32> to vector<128x128xbf16>
    %c0_10 = arith.constant 0 : index
    %c0_11 = arith.constant 0 : index
    %10 = vector.load %arg6[%c0_10, %c0_11] : memref<128x128xbf16, #tpu.memory_space<vmem>>, vector<128x128xbf16>
    tpu.vector_store %arg6[%c0_10, %c0_11], %9 {strides = array<i32>} : memref<128x128xbf16, #tpu.memory_space<vmem>>, vector<128x128xbf16>,
    return
  }
  func.func @transform_0(%arg0: i32) -> (i32, i32) {
    %c0_i32 = arith.constant 0 : i32
    %c0_i32_0 = arith.constant 0 : i32
    return %arg0, %c0_i32 : i32, i32
  }
  func.func @transform_1(%arg0: i32) -> (i32, i32) {
    %c0_i32 = arith.constant 0 : i32
    %c0_i32_0 = arith.constant 0 : i32
    %c0_i32_1 = arith.constant 0 : i32
    return %c0_i32, %c0_i32_0 : i32, i32
  }
  func.func @transform_2(%arg0: i32) -> (i32, i32) {
    %c0_i32 = arith.constant 0 : i32
    %c0_i32_0 = arith.constant 0 : i32
    %c0_i32_1 = arith.constant 0 : i32
    return %c0_i32, %c0_i32_0 : i32, i32
  }
  func.func @transform_3(%arg0: i32) -> (i32, i32) {
    %c0_i32 = arith.constant 0 : i32
    %c0_i32_0 = arith.constant 0 : i32
    %c0_i32_1 = arith.constant 0 : i32
    return %c0_i32, %c0_i32_0 : i32, i32
  }
  func.func @transform_4(%arg0: i32) -> (i32, i32) {
    %c0_i32 = arith.constant 0 : i32
    %c0_i32_0 = arith.constant 0 : i32
    return %arg0, %c0_i32 : i32, i32
  }
  func.func @transform_5(%arg0: i32) -> (i32, i32) {
    %c0_i32 = arith.constant 0 : i32
    %c0_i32_0 = arith.constant 0 : i32
    return %arg0, %c0_i32 : i32, i32
  }
}

module attributes {stable_mosaic.version = 11 : i64} {
  func.func @_sage_aggregate_kernel(%arg0: i32, %arg1: i32, %arg2: memref<128x128xbf16, #tpu.memory_space<vmem>>, %arg3: memref<128x128xbf16, #tpu.memory_space<vmem>>, %arg4: memref<128x128xf32, #tpu.memory_space<vmem>>, %arg5: memref<128x128xbf16, #tpu.memory_space<vmem>>, %arg6: memref<128x128xf32, #tpu.memory_space<vmem>>) attributes {dimension_semantics = [#tpu.dimension_semantics<parallel>, #tpu.dimension_semantics<arbitrary>], iteration_bounds = array<i64: 2, 2>, scalar_prefetch = 0 : i64, scratch_operands = 1 : i64, tpu.core_type = #tpu.core_type<tc>, window_params = [{transform_indices = @transform_0, window_bounds = array<i64: 128, 128>}, {transform_indices = @transform_1, window_bounds = array<i64: 128, 128>}, {transform_indices = @transform_2, window_bounds = array<i64: 128, 128>}, {transform_indices = @transform_3, window_bounds = array<i64: 128, 128>}]} {
    %c0_i32 = arith.constant 0 : i32
    %0 = arith.cmpi eq, %arg1, %c0_i32 : i32
    %1 = arith.extui %0 : i1 to i32
    %c0_i32_0 = arith.constant 0 : i32
    %2 = arith.cmpi ne, %1, %c0_i32_0 : i32
    scf.if %2 {
      %c0_9 = arith.constant 0 : index
      %c0_10 = arith.constant 0 : index
      %12 = vector.load %arg4[%c0_9, %c0_10] : memref<128x128xf32, #tpu.memory_space<vmem>>, vector<128x128xf32>
      %c0_11 = arith.constant 0 : index
      %c0_12 = arith.constant 0 : index
      %13 = vector.load %arg6[%c0_11, %c0_12] : memref<128x128xf32, #tpu.memory_space<vmem>>, vector<128x128xf32>
      tpu.vector_store %arg6[%c0_11, %c0_12], %12 {strides = array<i32>} : memref<128x128xf32, #tpu.memory_space<vmem>>, vector<128x128xf32>,
    } else {
    }
    %c0 = arith.constant 0 : index
    %c0_1 = arith.constant 0 : index
    %3 = vector.load %arg6[%c0, %c0_1] : memref<128x128xf32, #tpu.memory_space<vmem>>, vector<128x128xf32>
    %c0_2 = arith.constant 0 : index
    %c0_3 = arith.constant 0 : index
    %4 = vector.load %arg2[%c0_2, %c0_3] : memref<128x128xbf16, #tpu.memory_space<vmem>>, vector<128x128xbf16>
    %c0_4 = arith.constant 0 : index
    %c0_5 = arith.constant 0 : index
    %5 = vector.load %arg3[%c0_4, %c0_5] : memref<128x128xbf16, #tpu.memory_space<vmem>>, vector<128x128xbf16>
    %cst = arith.constant dense<0.000000e+00> : vector<128x128xf32>
    %6 = tpu.matmul %4, %5, %cst {dimension_numbers = #tpu.dot_dimension_numbers<[1], [0], [0], [1], [0, 0, 1, 1], [], []>} : vector<128x128xbf16>, vector<128x128xbf16>, vector<128x128xf32> -> vector<128x128xf32>
    %7 = arith.addf %3, %6 : vector<128x128xf32>
    %c0_6 = arith.constant 0 : index
    %c0_7 = arith.constant 0 : index
    %8 = vector.load %arg6[%c0_6, %c0_7] : memref<128x128xf32, #tpu.memory_space<vmem>>, vector<128x128xf32>
    tpu.vector_store %arg6[%c0_6, %c0_7], %7 {strides = array<i32>} : memref<128x128xf32, #tpu.memory_space<vmem>>, vector<128x128xf32>,
    %c1_i32 = arith.constant 1 : i32
    %9 = arith.cmpi eq, %arg1, %c1_i32 : i32
    %10 = arith.extui %9 : i1 to i32
    %c0_i32_8 = arith.constant 0 : i32
    %11 = arith.cmpi ne, %10, %c0_i32_8 : i32
    scf.if %11 {
      %c0_9 = arith.constant 0 : index
      %c0_10 = arith.constant 0 : index
      %12 = vector.load %arg6[%c0_9, %c0_10] : memref<128x128xf32, #tpu.memory_space<vmem>>, vector<128x128xf32>
      %cst_11 = arith.constant 0.000000e+00 : f32
      %13 = vector.broadcast %cst_11 : f32 to vector<128x128xf32>
      %14 = arith.maximumf %12, %13 : vector<128x128xf32>
      %15 = arith.truncf %14 : vector<128x128xf32> to vector<128x128xbf16>
      %c0_12 = arith.constant 0 : index
      %c0_13 = arith.constant 0 : index
      %16 = vector.load %arg5[%c0_12, %c0_13] : memref<128x128xbf16, #tpu.memory_space<vmem>>, vector<128x128xbf16>
      tpu.vector_store %arg5[%c0_12, %c0_13], %15 {strides = array<i32>} : memref<128x128xbf16, #tpu.memory_space<vmem>>, vector<128x128xbf16>,
    } else {
    }
    return
  }
  func.func @transform_0(%arg0: i32, %arg1: i32) -> (i32, i32) {
    %c0_i32 = arith.constant 0 : i32
    return %arg0, %arg1 : i32, i32
  }
  func.func @transform_1(%arg0: i32, %arg1: i32) -> (i32, i32) {
    %c0_i32 = arith.constant 0 : i32
    %c0_i32_0 = arith.constant 0 : i32
    return %arg1, %c0_i32 : i32, i32
  }
  func.func @transform_2(%arg0: i32, %arg1: i32) -> (i32, i32) {
    %c0_i32 = arith.constant 0 : i32
    %c0_i32_0 = arith.constant 0 : i32
    return %arg0, %c0_i32 : i32, i32
  }
  func.func @transform_3(%arg0: i32, %arg1: i32) -> (i32, i32) {
    %c0_i32 = arith.constant 0 : i32
    %c0_i32_0 = arith.constant 0 : i32
    return %arg0, %c0_i32 : i32, i32
  }
}

module attributes {stable_mosaic.version = 11 : i64} {
  func.func @_sage_aggregate_kernel(%arg0: i32, %arg1: i32, %arg2: memref<128x128xbf16, #tpu.memory_space<vmem>>, %arg3: memref<128x128xbf16, #tpu.memory_space<vmem>>, %arg4: memref<128x128xf32, #tpu.memory_space<vmem>>, %arg5: memref<128x128xf32, #tpu.memory_space<vmem>>, %arg6: memref<128x128xf32, #tpu.memory_space<vmem>>) attributes {dimension_semantics = [#tpu.dimension_semantics<parallel>, #tpu.dimension_semantics<arbitrary>], iteration_bounds = array<i64: 2, 2>, scalar_prefetch = 0 : i64, scratch_operands = 1 : i64, tpu.core_type = #tpu.core_type<tc>, window_params = [{transform_indices = @transform_0, window_bounds = array<i64: 128, 128>}, {transform_indices = @transform_1, window_bounds = array<i64: 128, 128>}, {transform_indices = @transform_2, window_bounds = array<i64: 128, 128>}, {transform_indices = @transform_3, window_bounds = array<i64: 128, 128>}]} {
    %c0_i32 = arith.constant 0 : i32
    %0 = arith.cmpi eq, %arg1, %c0_i32 : i32
    %1 = arith.extui %0 : i1 to i32
    %c0_i32_0 = arith.constant 0 : i32
    %2 = arith.cmpi ne, %1, %c0_i32_0 : i32
    scf.if %2 {
      %c0_9 = arith.constant 0 : index
      %c0_10 = arith.constant 0 : index
      %12 = vector.load %arg4[%c0_9, %c0_10] : memref<128x128xf32, #tpu.memory_space<vmem>>, vector<128x128xf32>
      %c0_11 = arith.constant 0 : index
      %c0_12 = arith.constant 0 : index
      %13 = vector.load %arg6[%c0_11, %c0_12] : memref<128x128xf32, #tpu.memory_space<vmem>>, vector<128x128xf32>
      tpu.vector_store %arg6[%c0_11, %c0_12], %12 {strides = array<i32>} : memref<128x128xf32, #tpu.memory_space<vmem>>, vector<128x128xf32>,
    } else {
    }
    %c0 = arith.constant 0 : index
    %c0_1 = arith.constant 0 : index
    %3 = vector.load %arg6[%c0, %c0_1] : memref<128x128xf32, #tpu.memory_space<vmem>>, vector<128x128xf32>
    %c0_2 = arith.constant 0 : index
    %c0_3 = arith.constant 0 : index
    %4 = vector.load %arg2[%c0_2, %c0_3] : memref<128x128xbf16, #tpu.memory_space<vmem>>, vector<128x128xbf16>
    %c0_4 = arith.constant 0 : index
    %c0_5 = arith.constant 0 : index
    %5 = vector.load %arg3[%c0_4, %c0_5] : memref<128x128xbf16, #tpu.memory_space<vmem>>, vector<128x128xbf16>
    %cst = arith.constant dense<0.000000e+00> : vector<128x128xf32>
    %6 = tpu.matmul %4, %5, %cst {dimension_numbers = #tpu.dot_dimension_numbers<[1], [0], [0], [1], [0, 0, 1, 1], [], []>} : vector<128x128xbf16>, vector<128x128xbf16>, vector<128x128xf32> -> vector<128x128xf32>
    %7 = arith.addf %3, %6 : vector<128x128xf32>
    %c0_6 = arith.constant 0 : index
    %c0_7 = arith.constant 0 : index
    %8 = vector.load %arg6[%c0_6, %c0_7] : memref<128x128xf32, #tpu.memory_space<vmem>>, vector<128x128xf32>
    tpu.vector_store %arg6[%c0_6, %c0_7], %7 {strides = array<i32>} : memref<128x128xf32, #tpu.memory_space<vmem>>, vector<128x128xf32>,
    %c1_i32 = arith.constant 1 : i32
    %9 = arith.cmpi eq, %arg1, %c1_i32 : i32
    %10 = arith.extui %9 : i1 to i32
    %c0_i32_8 = arith.constant 0 : i32
    %11 = arith.cmpi ne, %10, %c0_i32_8 : i32
    scf.if %11 {
      %c0_9 = arith.constant 0 : index
      %c0_10 = arith.constant 0 : index
      %12 = vector.load %arg6[%c0_9, %c0_10] : memref<128x128xf32, #tpu.memory_space<vmem>>, vector<128x128xf32>
      %13 = tpu.iota {dimensions = array<i32: 1>} : vector<128x128xi32>
      %c8_i32 = arith.constant 8 : i32
      %14 = vector.broadcast %c8_i32 : i32 to vector<128x128xi32>
      %15 = arith.cmpi slt, %13, %14 : vector<128x128xi32>
      %cst_11 = arith.constant 0xFF800000 : f32
      %16 = vector.broadcast %cst_11 : f32 to vector<128x128xf32>
      %17 = arith.select %15, %12, %16 : vector<128x128xi1>, vector<128x128xf32>
      %cst_12 = arith.constant dense<0xFF800000> : vector<128xf32>
      %18 = vector.multi_reduction <maximumf>, %17, %cst_12 [1] : vector<128x128xf32> to vector<128xf32>
      %19 = vector.shape_cast %18 : vector<128xf32> to vector<128x1xf32>
      %20 = vector.broadcast %19 : vector<128x1xf32> to vector<128x128xf32>
      %21 = arith.subf %12, %20 : vector<128x128xf32>
      %22 = math.exp %21 : vector<128x128xf32>
      %cst_13 = arith.constant 0.000000e+00 : f32
      %23 = vector.broadcast %cst_13 : f32 to vector<128x128xf32>
      %24 = arith.select %15, %22, %23 : vector<128x128xi1>, vector<128x128xf32>
      %cst_14 = arith.constant dense<0.000000e+00> : vector<128xf32>
      %25 = vector.multi_reduction <add>, %24, %cst_14 [1] : vector<128x128xf32> to vector<128xf32>
      %26 = vector.shape_cast %25 : vector<128xf32> to vector<128x1xf32>
      %27 = math.log %26 : vector<128x1xf32>
      %28 = arith.addf %19, %27 : vector<128x1xf32>
      %29 = vector.broadcast %28 : vector<128x1xf32> to vector<128x128xf32>
      %30 = arith.subf %12, %29 : vector<128x128xf32>
      %c0_15 = arith.constant 0 : index
      %c0_16 = arith.constant 0 : index
      %31 = vector.load %arg5[%c0_15, %c0_16] : memref<128x128xf32, #tpu.memory_space<vmem>>, vector<128x128xf32>
      tpu.vector_store %arg5[%c0_15, %c0_16], %30 {strides = array<i32>} : memref<128x128xf32, #tpu.memory_space<vmem>>, vector<128x128xf32>,
    } else {
    }
    return
  }
  func.func @transform_0(%arg0: i32, %arg1: i32) -> (i32, i32) {
    %c0_i32 = arith.constant 0 : i32
    return %arg0, %arg1 : i32, i32
  }
  func.func @transform_1(%arg0: i32, %arg1: i32) -> (i32, i32) {
    %c0_i32 = arith.constant 0 : i32
    %c0_i32_0 = arith.constant 0 : i32
    return %arg1, %c0_i32 : i32, i32
  }
  func.func @transform_2(%arg0: i32, %arg1: i32) -> (i32, i32) {
    %c0_i32 = arith.constant 0 : i32
    %c0_i32_0 = arith.constant 0 : i32
    return %arg0, %c0_i32 : i32, i32
  }
  func.func @transform_3(%arg0: i32, %arg1: i32) -> (i32, i32) {
    %c0_i32 = arith.constant 0 : i32
    %c0_i32_0 = arith.constant 0 : i32
    return %arg0, %c0_i32 : i32, i32
  }
}

</mosaic_0001>

<llo_original>
// kernel: graphsage_forward.6
$region0: #{graphsage_forward.6}
  #allocation0 [shape = 'u32[]', space=smem, size = 0x4, offset = 0x4, fixed_abs, tag = 'smem constant byte address 0x4 - core index']
  #allocation1 [shape = 'u32[144,128]{1,0:T(1,128)}', space=vmem, size = 0x12000, scoped, tag = 'internal scratch']
  %s0 = inlined_call_operand.vmem [shape: bf16[256,128], index: 0, kind: input, shape index: {}]
  %s1 = inlined_call_operand.vmem [shape: bf16[128,128], index: 1, kind: input, shape index: {}]
  %s2 = inlined_call_operand.vmem [shape: bf16[128,128], index: 2, kind: input, shape index: {}]
  %s3 = inlined_call_operand.vmem [shape: f32[1,128], index: 3, kind: input, shape index: {}]
  %s4 = inlined_call_operand.vmem [shape: f32[256,128], index: 4, kind: output, shape index: {0}]
  %s5 = inlined_call_operand.vmem [shape: bf16[256,128], index: 5, kind: output, shape index: {1}]
  %6 = xla_tuple %s4, %s5
  %s7 = sld [smem:[#allocation0]]
  $region57: #{graphsage_forward.6} parent=0
    _
  %s9 = ssub.s32 1, %s7
  %s10 = scalar_select 0, %s9, %s7
  loop: start=0, step=1, limit=4
  $region2: #{graphsage_forward.6} parent=0 // loop_pre_header
    _
  $region3: #{graphsage_forward.6} parent=0 // loop_header
    %s12 = sphi 0, %s16
    %p13 = scmp.ge.s32.totalorder %s12, 4
    %s22 = sphi 0, %s24
    %s25 = sphi 0, %s22
    %s26 = sphi 0, %s25
    %s42 = sphi 0, %s26
    %s46 = sphi 0, %s46
    %s48 = sphi 0, %s46
    %s49 = sphi 0, %s48
    %s63 = sphi 0, %s49
    %s67 = sphi 0, %s67
    %s69 = sphi 0, %s67
    %s70 = sphi 0, %s69
    %s84 = sphi 0, %s70
    %s88 = sphi 0, %s88
    %s90 = sphi 0, %s88
    %s91 = sphi 0, %s90
    %s105 = sphi 0, %s91
    %s111 = sphi 0, %s113
    %s114 = sphi 0, %s111
    %s115 = sphi 0, %s114
    %s131 = sphi 0, %s115
    %s137 = sphi 0, %s139
    %s140 = sphi 0, %s137
    %s141 = sphi 0, %s140
    %s157 = sphi 0, %s141
  $region4: #{graphsage_forward.6} parent=0 // loop_header_branch
    %15 = sbr.rel (%p13) target = $region8
  $region5: #{graphsage_forward.6} parent=0 // loop_body
    %s17 = ssub.s32 %s12, 1
    %s18 = ssub.s32 %s12, 2
    %s19 = sadd.s32 %s12, 1
    %s20 = ssub.s32 %s12, %s19
    %p21 = scmp.eq.s32.totalorder %s20, 0
    %s23 = sadd.s32 %s22, 1
    %s24 = scalar_select %p21, %s22, %s23
    %p27 = pneg %p21
    %p28 = scmp.eq.s32.totalorder %s12, 1
    %p29 = por %p27, %p28
    %p30 = scmp.ne.s32.totalorder %s22, %s25
    %p31 = scmp.eq.s32.totalorder %s12, 0
    %p32 = por %p30, %p31
    %p33 = scmp.ne.s32.totalorder %s22, %s25
    %p34 = scmp.eq.s32.totalorder %s17, 1
    %p35 = por %p33, %p34
    %p36 = scmp.ne.s32.totalorder %s25, %s26
    %p37 = scmp.eq.s32.totalorder %s17, 0
    %p38 = por %p36, %p37
    %p39 = scmp.ne.s32.totalorder %s25, %s26
    %p40 = scmp.eq.s32.totalorder %s18, 1
    %p41 = por %p39, %p40
    %p43 = scmp.ne.s32.totalorder %s26, %s42
    %p44 = scmp.eq.s32.totalorder %s18, 0
    %p45 = por %p43, %p44
    %s47 = sadd.s32 %s46, 1
    %p50 = scmp.eq.s32.totalorder %s12, 1
    %p51 = scmp.ne.s32.totalorder %s46, %s48
    %p52 = scmp.eq.s32.totalorder %s12, 0
    %p53 = por %p51, %p52
    %p54 = scmp.ne.s32.totalorder %s46, %s48
    %p55 = scmp.eq.s32.totalorder %s17, 1
    %p56 = por %p54, %p55
    %p57 = scmp.ne.s32.totalorder %s48, %s49
    %p58 = scmp.eq.s32.totalorder %s17, 0
    %p59 = por %p57, %p58
    %p60 = scmp.ne.s32.totalorder %s48, %s49
    %p61 = scmp.eq.s32.totalorder %s18, 1
    %p62 = por %p60, %p61
    %p64 = scmp.ne.s32.totalorder %s49, %s63
    %p65 = scmp.eq.s32.totalorder %s18, 0
    %p66 = por %p64, %p65
    %s68 = sadd.s32 %s67, 1
    %p71 = scmp.eq.s32.totalorder %s12, 1
    %p72 = scmp.ne.s32.totalorder %s67, %s69
    %p73 = scmp.eq.s32.totalorder %s12, 0
    %p74 = por %p72, %p73
    %p75 = scmp.ne.s32.totalorder %s67, %s69
    %p76 = scmp.eq.s32.totalorder %s17, 1
    %p77 = por %p75, %p76
    %p78 = scmp.ne.s32.totalorder %s69, %s70
    %p79 = scmp.eq.s32.totalorder %s17, 0
    %p80 = por %p78, %p79
    %p81 = scmp.ne.s32.totalorder %s69, %s70
    %p82 = scmp.eq.s32.totalorder %s18, 1
    %p83 = por %p81, %p82
    %p85 = scmp.ne.s32.totalorder %s70, %s84
    %p86 = scmp.eq.s32.totalorder %s18, 0
    %p87 = por %p85, %p86
    %s89 = sadd.s32 %s88, 1
    %p92 = scmp.eq.s32.totalorder %s12, 1
    %p93 = scmp.ne.s32.totalorder %s88, %s90
    %p94 = scmp.eq.s32.totalorder %s12, 0
    %p95 = por %p93, %p94
    %p96 = scmp.ne.s32.totalorder %s88, %s90
    %p97 = scmp.eq.s32.totalorder %s17, 1
    %p98 = por %p96, %p97
    %p99 = scmp.ne.s32.totalorder %s90, %s91
    %p100 = scmp.eq.s32.totalorder %s17, 0
    %p101 = por %p99, %p100
    %p102 = scmp.ne.s32.totalorder %s90, %s91
    %p103 = scmp.eq.s32.totalorder %s18, 1
    %p104 = por %p102, %p103
    %p106 = scmp.ne.s32.totalorder %s91, %s105
    %p107 = scmp.eq.s32.totalorder %s18, 0
    %p108 = por %p106, %p107
    %s109 = ssub.s32 %s12, %s19
    %p110 = scmp.eq.s32.totalorder %s109, 0
    %s112 = sadd.s32 %s111, 1
    %s113 = scalar_select %p110, %s111, %s112
    %p116 = pneg %p110
    %p117 = scmp.eq.s32.totalorder %s12, 1
    %p118 = por %p116, %p117
    %p119 = scmp.ne.s32.totalorder %s111, %s114
    %p120 = scmp.eq.s32.totalorder %s12, 0
    %p121 = por %p119, %p120
    %p122 = scmp.ne.s32.totalorder %s111, %s114
    %p123 = scmp.eq.s32.totalorder %s17, 1
    %p124 = por %p122, %p123
    %p125 = scmp.ne.s32.totalorder %s114, %s115
    %p126 = scmp.eq.s32.totalorder %s17, 0
    %p127 = por %p125, %p126
    %p128 = scmp.ne.s32.totalorder %s114, %s115
    %p129 = scmp.eq.s32.totalorder %s18, 1
    %p130 = por %p128, %p129
    %p132 = scmp.ne.s32.totalorder %s115, %s131
    %p133 = scmp.eq.s32.totalorder %s18, 0
    %p134 = por %p132, %p133
    %s135 = ssub.s32 %s12, %s19
    %p136 = scmp.eq.s32.totalorder %s135, 0
    %s138 = sadd.s32 %s137, 1
    %s139 = scalar_select %p136, %s137, %s138
    %p142 = pneg %p136
    %p143 = scmp.eq.s32.totalorder %s12, 1
    %p144 = por %p142, %p143
    %p145 = scmp.ne.s32.totalorder %s137, %s140
    %p146 = scmp.eq.s32.totalorder %s12, 0
    %p147 = por %p145, %p146
    %p148 = scmp.ne.s32.totalorder %s137, %s140
    %p149 = scmp.eq.s32.totalorder %s17, 1
    %p150 = por %p148, %p149
    %p151 = scmp.ne.s32.totalorder %s140, %s141
    %p152 = scmp.eq.s32.totalorder %s17, 0
    %p153 = por %p151, %p152
    %p154 = scmp.ne.s32.totalorder %s140, %s141
    %p155 = scmp.eq.s32.totalorder %s18, 1
    %p156 = por %p154, %p155
    %p158 = scmp.ne.s32.totalorder %s141, %s157
    %p159 = scmp.eq.s32.totalorder %s18, 0
    %p160 = por %p158, %p159
    %p161 = scmp.le.s32.totalorder 1, %s12
    %p162 = scmp.lt.s32.totalorder %s12, 3
    %p163 = pnand %p161, %p162
    %p164 = pneg %p163
    // Predicated region
    $region9: #{graphsage_forward.6} parent=5 // pred_check
      _
    $region10: #{graphsage_forward.6} parent=5 // pred_check_branch
      %166 = sbr.rel (%p163) target = $region12
    $region11: #{graphsage_forward.6} parent=5 // pred_region
      %s167 = ssub.s32 %s12, 1
      // Predicated region
      $region13: #{graphsage_forward.6} parent=11 // pred_check
        %p168 = pneg %p59
      $region14: #{graphsage_forward.6} parent=11 // pred_check_branch
        %170 = sbr.rel (%p168) target = $region16
      $region15: #{graphsage_forward.6} parent=11 // pred_region
        _
      $region16: #{graphsage_forward.6} parent=11 // pred_fallthru
        _
      // Predicated region
      $region17: #{graphsage_forward.6} parent=11 // pred_check
        %p171 = pneg %p80
      $region18: #{graphsage_forward.6} parent=11 // pred_check_branch
        %173 = sbr.rel (%p171) target = $region20
      $region19: #{graphsage_forward.6} parent=11 // pred_region
        _
      $region20: #{graphsage_forward.6} parent=11 // pred_fallthru
        _
      // Predicated region
      $region21: #{graphsage_forward.6} parent=11 // pred_check
        %p174 = pneg %p101
      $region22: #{graphsage_forward.6} parent=11 // pred_check_branch
        %176 = sbr.rel (%p174) target = $region24
      $region23: #{graphsage_forward.6} parent=11 // pred_region
        _
      $region24: #{graphsage_forward.6} parent=11 // pred_fallthru
        _
    $region12: #{graphsage_forward.6} parent=5 // pred_fallthru
      _
    %p177 = scmp.lt.s32.totalorder %s12, 2
    // Predicated region
    $region25: #{graphsage_forward.6} parent=5 // pred_check
      %p178 = pneg %p177
    $region26: #{graphsage_forward.6} parent=5 // pred_check_branch
      %180 = sbr.rel (%p178) target = $region28
    $region27: #{graphsage_forward.6} parent=5 // pred_region
      // Predicated region
      $region29: #{graphsage_forward.6} parent=27 // pred_check
        %p181 = pneg %p32
      $region30: #{graphsage_forward.6} parent=27 // pred_check_branch
        %183 = sbr.rel (%p181) target = $region32
      $region31: #{graphsage_forward.6} parent=27 // pred_region
        %s184 = smul.u32 16, %s12
        %p185 = scmp.lt.s32.totalorder %s184, 31
        %s186 = scalar_select %p185, %s184, 31
        %s187 = smul.addr %s186, 4
        %s188 = scalar_lea.vmem %s0, %s187
        %s189 = smul.u32 16, %s12
      $region32: #{graphsage_forward.6} parent=27 // pred_fallthru
        _
    $region28: #{graphsage_forward.6} parent=5 // pred_fallthru
      _
    %p190 = scmp.le.s32.totalorder 1, %s12
    %p191 = scmp.lt.s32.totalorder %s12, 3
    %p192 = pnand %p190, %p191
    %p193 = pneg %p192
    // Predicated region
    $region33: #{graphsage_forward.6} parent=5 // pred_check
      _
    $region34: #{graphsage_forward.6} parent=5 // pred_check_branch
      %195 = sbr.rel (%p192) target = $region36
    $region35: #{graphsage_forward.6} parent=5 // pred_region
      %s196 = ssub.s32 %s12, 1
      %s197 = smul.u32 16, %s17
      %p198 = scmp.lt.s32.totalorder %s197, 31
      %s199 = scalar_select %p198, %s197, 31
      %s200 = smul.addr %s199, 4
      %s201 = scalar_lea.vmem %s0, %s200
      %p202 = pneg %p38
      %p203 = pneg %p35
      %p204 = pneg %p59
      %p205 = pneg %p56
      %p206 = pneg %p80
      %p207 = pneg %p77
      %p208 = pneg %p101
      %p209 = pneg %p98
      %p210 = pneg %p127
      %p211 = pneg %p124
      %s212 = smul.u32 16, %s17
      %p213 = scmp.lt.s32.totalorder %s212, 31
      %s214 = scalar_select %p213, %s212, 31
      %s215 = smul.addr %s214, 8
      %s216 = scalar_lea.vmem %s4, %s215
      %p217 = pneg %p153
      %p218 = pneg %p150
      %s219 = smul.u32 16, %s17
      %p220 = scmp.lt.s32.totalorder %s219, 31
      %s221 = scalar_select %p220, %s219, 31
      %s222 = smul.addr %s221, 4
      %s223 = scalar_lea.vmem %s5, %s222
      %s224 = smul.u32 16, %s17
      %p225 = scmp.lt.s32.totalorder %s224, 31
      %s226 = scalar_select %p225, %s224, 31
      %s227 = smul.addr %s226, 4
      %s228 = scalar_lea.vmem %s0, %s227
      %s229 = smul.u32 16, %s17
      %s230 = smul.u32 16, %s17
      %p231 = scmp.lt.s32.totalorder %s230, 31
      %s232 = scalar_select %p231, %s230, 31
      %s233 = smul.addr %s232, 8
      %s234 = scalar_lea.vmem %s4, %s233
      %s235 = smul.u32 16, %s17
      %s236 = smul.u32 16, %s17
      %p237 = scmp.lt.s32.totalorder %s236, 31
      %s238 = scalar_select %p237, %s236, 31
      %s239 = smul.addr %s238, 4
      %s240 = scalar_lea.vmem %s5, %s239
      %s241 = smul.u32 16, %s17
      %v243 = vld [vmem:[%s228] sm:$0xf]
      %v244 = vld [vmem:[%s228 + $0x4] sm:$0xf]
      %v245 = vld [vmem:[%s228 + $0x8] sm:$0xf]
      %v246 = vld [vmem:[%s228 + $0xc] sm:$0xf]
      %v247 = vld [vmem:[%s228 + $0x10] sm:$0xf]
      %v248 = vld [vmem:[%s228 + $0x14] sm:$0xf]
      %v249 = vld [vmem:[%s228 + $0x18] sm:$0xf]
      %v250 = vld [vmem:[%s228 + $0x1c] sm:$0xf]
      %v251 = vld [vmem:[%s228 + $0x20] sm:$0xf]
      %v252 = vld [vmem:[%s228 + $0x24] sm:$0xf]
      %v253 = vld [vmem:[%s228 + $0x28] sm:$0xf]
      %v254 = vld [vmem:[%s228 + $0x2c] sm:$0xf]
      %v255 = vld [vmem:[%s228 + $0x30] sm:$0xf]
      %v256 = vld [vmem:[%s228 + $0x34] sm:$0xf]
      %v257 = vld [vmem:[%s228 + $0x38] sm:$0xf]
      %v258 = vld [vmem:[%s228 + $0x3c] sm:$0xf]
      %v259 = vld [vmem:[%s1] sm:$0xf]
      %v260 = vld [vmem:[%s1 + $0x4] sm:$0xf]
      %v261 = vld [vmem:[%s1 + $0x8] sm:$0xf]
      %v262 = vld [vmem:[%s1 + $0xc] sm:$0xf]
      %v263 = vld [vmem:[%s1 + $0x10] sm:$0xf]
      %v264 = vld [vmem:[%s1 + $0x14] sm:$0xf]
      %v265 = vld [vmem:[%s1 + $0x18] sm:$0xf]
      %v266 = vld [vmem:[%s1 + $0x1c] sm:$0xf]
      %v267 = vld [vmem:[%s1 + $0x20] sm:$0xf]
      %v268 = vld [vmem:[%s1 + $0x24] sm:$0xf]
      %v269 = vld [vmem:[%s1 + $0x28] sm:$0xf]
      %v270 = vld [vmem:[%s1 + $0x2c] sm:$0xf]
      %v271 = vld [vmem:[%s1 + $0x30] sm:$0xf]
      %v272 = vld [vmem:[%s1 + $0x34] sm:$0xf]
      %v273 = vld [vmem:[%s1 + $0x38] sm:$0xf]
      %v274 = vld [vmem:[%s1 + $0x3c] sm:$0xf]
      %v275 = vld [vmem:[%s3] sm:$0x1]
      %v277 = vlaneseq
      %v278 = vshrl.u32 %v277, 7
      %v279 = vsub.s32 0, %v278
      %v280 = vrot.slane %v275, %v279
      %v298 = vunpack.c.l.b16 %v243
      %v299 = vunpack.c.l.b16 %v244
      %v300 = vunpack.c.l.b16 %v245
      %v301 = vunpack.c.l.b16 %v246
      %v302 = vunpack.c.l.b16 %v247
      %v303 = vunpack.c.l.b16 %v248
      %v304 = vunpack.c.l.b16 %v249
      %v305 = vunpack.c.l.b16 %v250
      %v306 = vunpack.c.l.b16 %v251
      %v307 = vunpack.c.l.b16 %v252
      %v308 = vunpack.c.l.b16 %v253
      %v309 = vunpack.c.l.b16 %v254
      %v310 = vunpack.c.l.b16 %v255
      %v311 = vunpack.c.l.b16 %v256
      %v312 = vunpack.c.l.b16 %v257
      %v313 = vunpack.c.l.b16 %v258
      %v314 = vpack.c.b16 %v299, %v298
      %v315 = vpack.c.b16 %v301, %v300
      %v316 = vpack.c.b16 %v303, %v302
      %v317 = vpack.c.b16 %v305, %v304
      %v318 = vpack.c.b16 %v307, %v306
      %v319 = vpack.c.b16 %v309, %v308
      %v320 = vpack.c.b16 %v311, %v310
      %v321 = vpack.c.b16 %v313, %v312
      %v346 = vunpack.c.l.b16 %v259
      %v347 = vunpack.c.l.b16 %v260
      %v348 = vunpack.c.l.b16 %v261
      %v349 = vunpack.c.l.b16 %v262
      %v350 = vunpack.c.l.b16 %v263
      %v351 = vunpack.c.l.b16 %v264
      %v352 = vunpack.c.l.b16 %v265
      %v353 = vunpack.c.l.b16 %v266
      %v354 = vunpack.c.l.b16 %v267
      %v355 = vunpack.c.l.b16 %v268
      %v356 = vunpack.c.l.b16 %v269
      %v357 = vunpack.c.l.b16 %v270
      %v358 = vunpack.c.l.b16 %v271
      %v359 = vunpack.c.l.b16 %v272
      %v360 = vunpack.c.l.b16 %v273
      %v361 = vunpack.c.l.b16 %v274
      %v362 = vpack.c.b16 %v347, %v346
      %v363 = vpack.c.b16 %v349, %v348
      %v364 = vpack.c.b16 %v351, %v350
      %v365 = vpack.c.b16 %v353, %v352
      %v366 = vpack.c.b16 %v355, %v354
      %v367 = vpack.c.b16 %v357, %v356
      %v368 = vpack.c.b16 %v359, %v358
      %v369 = vpack.c.b16 %v361, %v360
      %378 = vmatprep.subr.bf16.mxu0 0
      %379 = vmatpush1.bf16.msra.mxu0 %v362
      %380 = vmatprep.subr.bf16.mxu0 0
      %381 = vmatpush1.bf16.msra.mxu0 %v363
      %382 = vmatprep.subr.bf16.mxu0 0
      %383 = vmatpush1.bf16.msra.mxu0 %v364
      %384 = vmatprep.subr.bf16.mxu0 0
      %385 = vmatpush1.bf16.msra.mxu0 %v365
      %386 = vmatprep.subr.bf16.mxu0 0
      %387 = vmatpush1.bf16.msra.mxu0 %v366
      %388 = vmatprep.subr.bf16.mxu0 0
      %389 = vmatpush1.bf16.msra.mxu0 %v367
      %390 = vmatprep.subr.bf16.mxu0 0
      %391 = vmatpush1.bf16.msra.mxu0 %v368
      %392 = vmatprep.subr.bf16.mxu0 0
      %393 = vmatpush1.bf16.msra.mxu0 %v369
      %394 = vmatprep.subr.bf16.mxu0 0
      %395 = vmatpush1.bf16.msra.mxu0 0
      %396 = vmatprep.subr.bf16.mxu0 0
      %397 = vmatpush1.bf16.msra.mxu0 0
      %398 = vmatprep.subr.bf16.mxu0 0
      %399 = vmatpush1.bf16.msra.mxu0 0
      %400 = vmatprep.subr.bf16.mxu0 0
      %401 = vmatpush1.bf16.msra.mxu0 0
      %402 = vmatprep.subr.bf16.mxu0 0
      %403 = vmatpush1.bf16.msra.mxu0 0
      %404 = vmatprep.subr.bf16.mxu0 0
      %405 = vmatpush1.bf16.msra.mxu0 0
      %406 = vmatprep.subr.bf16.mxu0 0
      %407 = vmatpush1.bf16.msra.mxu0 0
      %408 = vmatprep.subr.bf16.mxu0 0
      %409 = vmatpush1.bf16.msra.mxu0 0
      %410 = vmatprep.mubr.bf16.mxu0 0
      %411 = vmatmul.mubr.bf16.gmra.mrb[0].mxu0 %v314
      %v412 = vpop.f32.mrb[0].mxu0
      %v413 = vadd.f32 %v280, %v412
      %v414 = vpop.f32.mrb[0].mxu0
      %v415 = vpop.f32.mrb[0].mxu0
      %v416 = vadd.f32 %v280, %v415
      %v417 = vpop.f32.mrb[0].mxu0
      %418 = vmatprep.mubr.bf16.mxu0 0
      %419 = vmatmul.mubr.bf16.gmra.mrb[0].mxu0 %v315
      %v420 = vpop.f32.mrb[0].mxu0
      %v421 = vadd.f32 %v280, %v420
      %v422 = vpop.f32.mrb[0].mxu0
      %v423 = vpop.f32.mrb[0].mxu0
      %v424 = vadd.f32 %v280, %v423
      %v425 = vpop.f32.mrb[0].mxu0
      %426 = vmatprep.mubr.bf16.mxu0 0
      %427 = vmatmul.mubr.bf16.gmra.mrb[0].mxu0 %v316
      %v428 = vpop.f32.mrb[0].mxu0
      %v429 = vadd.f32 %v280, %v428
      %v430 = vpop.f32.mrb[0].mxu0
      %v431 = vpop.f32.mrb[0].mxu0
      %v432 = vadd.f32 %v280, %v431
      %v433 = vpop.f32.mrb[0].mxu0
      %434 = vmatprep.mubr.bf16.mxu0 0
      %435 = vmatmul.mubr.bf16.gmra.mrb[0].mxu0 %v317
      %v436 = vpop.f32.mrb[0].mxu0
      %v437 = vadd.f32 %v280, %v436
      %v438 = vpop.f32.mrb[0].mxu0
      %v439 = vpop.f32.mrb[0].mxu0
      %v440 = vadd.f32 %v280, %v439
      %v441 = vpop.f32.mrb[0].mxu0
      %442 = vmatprep.mubr.bf16.mxu0 0
      %443 = vmatmul.mubr.bf16.gmra.mrb[0].mxu0 %v318
      %v444 = vpop.f32.mrb[0].mxu0
      %v445 = vadd.f32 %v280, %v444
      %v446 = vpop.f32.mrb[0].mxu0
      %v447 = vpop.f32.mrb[0].mxu0
      %v448 = vadd.f32 %v280, %v447
      %v449 = vpop.f32.mrb[0].mxu0
      %450 = vmatprep.mubr.bf16.mxu0 0
      %451 = vmatmul.mubr.bf16.gmra.mrb[0].mxu0 %v319
      %v452 = vpop.f32.mrb[0].mxu0
      %v453 = vadd.f32 %v280, %v452
      %v454 = vpop.f32.mrb[0].mxu0
      %v455 = vpop.f32.mrb[0].mxu0
      %v456 = vadd.f32 %v280, %v455
      %v457 = vpop.f32.mrb[0].mxu0
      %458 = vmatprep.mubr.bf16.mxu0 0
      %459 = vmatmul.mubr.bf16.gmra.mrb[0].mxu0 %v320
      %v460 = vpop.f32.mrb[0].mxu0
      %v461 = vadd.f32 %v280, %v460
      %v462 = vpop.f32.mrb[0].mxu0
      %v463 = vpop.f32.mrb[0].mxu0
      %v464 = vadd.f32 %v280, %v463
      %v465 = vpop.f32.mrb[0].mxu0
      %466 = vmatprep.mubr.bf16.mxu0 0
      %467 = vmatmul.mubr.bf16.gmra.mrb[0].mxu0 %v321
      %v468 = vpop.f32.mrb[0].mxu0
      %v469 = vadd.f32 %v280, %v468
      %v470 = vpop.f32.mrb[0].mxu0
      %v471 = vpop.f32.mrb[0].mxu0
      %v472 = vadd.f32 %v280, %v471
      %v473 = vpop.f32.mrb[0].mxu0
      %474 = vdwg.mxu0
      %475 = vst [vmem:[%s234] sm:$0xff] %v413
      %476 = vst [vmem:[%s234 + $0x8] sm:$0xff] %v416
      %477 = vst [vmem:[%s234 + $0x10] sm:$0xff] %v421
      %478 = vst [vmem:[%s234 + $0x18] sm:$0xff] %v424
      %479 = vst [vmem:[%s234 + $0x20] sm:$0xff] %v429
      %480 = vst [vmem:[%s234 + $0x28] sm:$0xff] %v432
      %481 = vst [vmem:[%s234 + $0x30] sm:$0xff] %v437
      %482 = vst [vmem:[%s234 + $0x38] sm:$0xff] %v440
      %483 = vst [vmem:[%s234 + $0x40] sm:$0xff] %v445
      %484 = vst [vmem:[%s234 + $0x48] sm:$0xff] %v448
      %485 = vst [vmem:[%s234 + $0x50] sm:$0xff] %v453
      %486 = vst [vmem:[%s234 + $0x58] sm:$0xff] %v456
      %487 = vst [vmem:[%s234 + $0x60] sm:$0xff] %v461
      %488 = vst [vmem:[%s234 + $0x68] sm:$0xff] %v464
      %489 = vst [vmem:[%s234 + $0x70] sm:$0xff] %v469
      %490 = vst [vmem:[%s234 + $0x78] sm:$0xff] %v472
      %v491 = vld [vmem:[%s2] sm:$0xf]
      %v492 = vld [vmem:[%s2 + $0x4] sm:$0xf]
      %v493 = vld [vmem:[%s2 + $0x8] sm:$0xf]
      %v494 = vld [vmem:[%s2 + $0xc] sm:$0xf]
      %v495 = vld [vmem:[%s2 + $0x10] sm:$0xf]
      %v496 = vld [vmem:[%s2 + $0x14] sm:$0xf]
      %v497 = vld [vmem:[%s2 + $0x18] sm:$0xf]
      %v498 = vld [vmem:[%s2 + $0x1c] sm:$0xf]
      %v499 = vld [vmem:[%s2 + $0x20] sm:$0xf]
      %v500 = vld [vmem:[%s2 + $0x24] sm:$0xf]
      %v501 = vld [vmem:[%s2 + $0x28] sm:$0xf]
      %v502 = vld [vmem:[%s2 + $0x2c] sm:$0xf]
      %v503 = vld [vmem:[%s2 + $0x30] sm:$0xf]
      %v504 = vld [vmem:[%s2 + $0x34] sm:$0xf]
      %v505 = vld [vmem:[%s2 + $0x38] sm:$0xf]
      %v506 = vld [vmem:[%s2 + $0x3c] sm:$0xf]
      %v523 = vunpack.c.l.b16 %v491
      %v524 = vunpack.c.l.b16 %v492
      %v525 = vunpack.c.l.b16 %v493
      %v526 = vunpack.c.l.b16 %v494
      %v527 = vunpack.c.l.b16 %v495
      %v528 = vunpack.c.l.b16 %v496
      %v529 = vunpack.c.l.b16 %v497
      %v530 = vunpack.c.l.b16 %v498
      %v531 = vunpack.c.l.b16 %v499
      %v532 = vunpack.c.l.b16 %v500
      %v533 = vunpack.c.l.b16 %v501
      %v534 = vunpack.c.l.b16 %v502
      %v535 = vunpack.c.l.b16 %v503
      %v536 = vunpack.c.l.b16 %v504
      %v537 = vunpack.c.l.b16 %v505
      %v538 = vunpack.c.l.b16 %v506
      %v539 = vpack.c.b16 %v524, %v523
      %v540 = vpack.c.b16 %v526, %v525
      %v541 = vpack.c.b16 %v528, %v527
      %v542 = vpack.c.b16 %v530, %v529
      %v543 = vpack.c.b16 %v532, %v531
      %v544 = vpack.c.b16 %v534, %v533
      %v545 = vpack.c.b16 %v536, %v535
      %v546 = vpack.c.b16 %v538, %v537
      %555 = vmatprep.subr.bf16.mxu0 0
      %556 = vmatpush1.bf16.msra.mxu0 %v539
      %557 = vmatprep.subr.bf16.mxu0 0
      %558 = vmatpush1.bf16.msra.mxu0 %v540
      %559 = vmatprep.subr.bf16.mxu0 0
      %560 = vmatpush1.bf16.msra.mxu0 %v541
      %561 = vmatprep.subr.bf16.mxu0 0
      %562 = vmatpush1.bf16.msra.mxu0 %v542
      %563 = vmatprep.subr.bf16.mxu0 0
      %564 = vmatpush1.bf16.msra.mxu0 %v543
      %565 = vmatprep.subr.bf16.mxu0 0
      %566 = vmatpush1.bf16.msra.mxu0 %v544
      %567 = vmatprep.subr.bf16.mxu0 0
      %568 = vmatpush1.bf16.msra.mxu0 %v545
      %569 = vmatprep.subr.bf16.mxu0 0
      %570 = vmatpush1.bf16.msra.mxu0 %v546
      %571 = vmatprep.subr.bf16.mxu0 0
      %572 = vmatpush1.bf16.msra.mxu0 0
      %573 = vmatprep.subr.bf16.mxu0 0
      %574 = vmatpush1.bf16.msra.mxu0 0
      %575 = vmatprep.subr.bf16.mxu0 0
      %576 = vmatpush1.bf16.msra.mxu0 0
      %577 = vmatprep.subr.bf16.mxu0 0
      %578 = vmatpush1.bf16.msra.mxu0 0
      %579 = vmatprep.subr.bf16.mxu0 0
      %580 = vmatpush1.bf16.msra.mxu0 0
      %581 = vmatprep.subr.bf16.mxu0 0
      %582 = vmatpush1.bf16.msra.mxu0 0
      %583 = vmatprep.subr.bf16.mxu0 0
      %584 = vmatpush1.bf16.msra.mxu0 0
      %585 = vmatprep.subr.bf16.mxu0 0
      %586 = vmatpush1.bf16.msra.mxu0 0
      %587 = vmatprep.mubr.bf16.mxu0 0
      %588 = vmatmul.mubr.bf16.gmra.mrb[0].mxu0 %v314
      %v589 = vpop.f32.mrb[0].mxu0
      %v590 = vadd.f32 0.0, %v589
      %v591 = vpop.f32.mrb[0].mxu0
      %v592 = vpop.f32.mrb[0].mxu0
      %v593 = vadd.f32 0.0, %v592
      %v594 = vpop.f32.mrb[0].mxu0
      %595 = vmatprep.mubr.bf16.mxu0 0
      %596 = vmatmul.mubr.bf16.gmra.mrb[0].mxu0 %v315
      %v597 = vpop.f32.mrb[0].mxu0
      %v598 = vadd.f32 0.0, %v597
      %v599 = vpop.f32.mrb[0].mxu0
      %v600 = vpop.f32.mrb[0].mxu0
      %v601 = vadd.f32 0.0, %v600
      %v602 = vpop.f32.mrb[0].mxu0
      %603 = vmatprep.mubr.bf16.mxu0 0
      %604 = vmatmul.mubr.bf16.gmra.mrb[0].mxu0 %v316
      %v605 = vpop.f32.mrb[0].mxu0
      %v606 = vadd.f32 0.0, %v605
      %v607 = vpop.f32.mrb[0].mxu0
      %v608 = vpop.f32.mrb[0].mxu0
      %v609 = vadd.f32 0.0, %v608
      %v610 = vpop.f32.mrb[0].mxu0
      %611 = vmatprep.mubr.bf16.mxu0 0
      %612 = vmatmul.mubr.bf16.gmra.mrb[0].mxu0 %v317
      %v613 = vpop.f32.mrb[0].mxu0
      %v614 = vadd.f32 0.0, %v613
      %v615 = vpop.f32.mrb[0].mxu0
      %v616 = vpop.f32.mrb[0].mxu0
      %v617 = vadd.f32 0.0, %v616
      %v618 = vpop.f32.mrb[0].mxu0
      %619 = vmatprep.mubr.bf16.mxu0 0
      %620 = vmatmul.mubr.bf16.gmra.mrb[0].mxu0 %v318
      %v621 = vpop.f32.mrb[0].mxu0
      %v622 = vadd.f32 0.0, %v621
      %v623 = vpop.f32.mrb[0].mxu0
      %v624 = vpop.f32.mrb[0].mxu0
      %v625 = vadd.f32 0.0, %v624
      %v626 = vpop.f32.mrb[0].mxu0
      %627 = vmatprep.mubr.bf16.mxu0 0
      %628 = vmatmul.mubr.bf16.gmra.mrb[0].mxu0 %v319
      %v629 = vpop.f32.mrb[0].mxu0
      %v630 = vadd.f32 0.0, %v629
      %v631 = vpop.f32.mrb[0].mxu0
      %v632 = vpop.f32.mrb[0].mxu0
      %v633 = vadd.f32 0.0, %v632
      %v634 = vpop.f32.mrb[0].mxu0
      %635 = vmatprep.mubr.bf16.mxu0 0
      %636 = vmatmul.mubr.bf16.gmra.mrb[0].mxu0 %v320
      %v637 = vpop.f32.mrb[0].mxu0
      %v638 = vadd.f32 0.0, %v637
      %v639 = vpop.f32.mrb[0].mxu0
      %v640 = vpop.f32.mrb[0].mxu0
      %v641 = vadd.f32 0.0, %v640
      %v642 = vpop.f32.mrb[0].mxu0
      %643 = vmatprep.mubr.bf16.mxu0 0
      %644 = vmatmul.mubr.bf16.gmra.mrb[0].mxu0 %v321
      %v645 = vpop.f32.mrb[0].mxu0
      %v646 = vadd.f32 0.0, %v645
      %v647 = vpop.f32.mrb[0].mxu0
      %v648 = vpop.f32.mrb[0].mxu0
      %v649 = vadd.f32 0.0, %v648
      %v650 = vpop.f32.mrb[0].mxu0
      %651 = vdwg.mxu0
      %v652 = vpack.c.bf16 %v593, %v590
      %v653 = vpack.c.bf16 %v601, %v598
      %v654 = vpack.c.bf16 %v609, %v606
      %v655 = vpack.c.bf16 %v617, %v614
      %v656 = vpack.c.bf16 %v625, %v622
      %v657 = vpack.c.bf16 %v633, %v630
      %v658 = vpack.c.bf16 %v641, %v638
      %v659 = vpack.c.bf16 %v649, %v646
      %v668 = vunpack.c.l.b16 %v652
      %v669 = vunpack.c.h.b16 %v652
      %v670 = vunpack.c.l.b16 %v653
      %v671 = vunpack.c.h.b16 %v653
      %v672 = vunpack.c.l.b16 %v654
      %v673 = vunpack.c.h.b16 %v654
      %v674 = vunpack.c.l.b16 %v655
      %v675 = vunpack.c.h.b16 %v655
      %v676 = vunpack.c.l.b16 %v656
      %v677 = vunpack.c.h.b16 %v656
      %v678 = vunpack.c.l.b16 %v657
      %v679 = vunpack.c.h.b16 %v657
      %v680 = vunpack.c.l.b16 %v658
      %v681 = vunpack.c.h.b16 %v658
      %v682 = vunpack.c.l.b16 %v659
      %v683 = vunpack.c.h.b16 %v659
      %v684 = vpack.c.b16 %v668, %v668
      %v685 = vpack.c.b16 %v669, %v669
      %v686 = vpack.c.b16 %v670, %v670
      %v687 = vpack.c.b16 %v671, %v671
      %v688 = vpack.c.b16 %v672, %v672
      %v689 = vpack.c.b16 %v673, %v673
      %v690 = vpack.c.b16 %v674, %v674
      %v691 = vpack.c.b16 %v675, %v675
      %v692 = vpack.c.b16 %v676, %v676
      %v693 = vpack.c.b16 %v677, %v677
      %v694 = vpack.c.b16 %v678, %v678
      %v695 = vpack.c.b16 %v679, %v679
      %v696 = vpack.c.b16 %v680, %v680
      %v697 = vpack.c.b16 %v681, %v681
      %v698 = vpack.c.b16 %v682, %v682
      %v699 = vpack.c.b16 %v683, %v683
      %716 = vst [vmem:[%s240] sm:$0xf] %v684
      %717 = vst [vmem:[%s240 + $0x4] sm:$0xf] %v685
      %718 = vst [vmem:[%s240 + $0x8] sm:$0xf] %v686
      %719 = vst [vmem:[%s240 + $0xc] sm:$0xf] %v687
      %720 = vst [vmem:[%s240 + $0x10] sm:$0xf] %v688
      %721 = vst [vmem:[%s240 + $0x14] sm:$0xf] %v689
      %722 = vst [vmem:[%s240 + $0x18] sm:$0xf] %v690
      %723 = vst [vmem:[%s240 + $0x1c] sm:$0xf] %v691
      %724 = vst [vmem:[%s240 + $0x20] sm:$0xf] %v692
      %725 = vst [vmem:[%s240 + $0x24] sm:$0xf] %v693
      %726 = vst [vmem:[%s240 + $0x28] sm:$0xf] %v694
      %727 = vst [vmem:[%s240 + $0x2c] sm:$0xf] %v695
      %728 = vst [vmem:[%s240 + $0x30] sm:$0xf] %v696
      %729 = vst [vmem:[%s240 + $0x34] sm:$0xf] %v697
      %730 = vst [vmem:[%s240 + $0x38] sm:$0xf] %v698
      %731 = vst [vmem:[%s240 + $0x3c] sm:$0xf] %v699
      %s732 = smul.u32 16, %s17
      %p733 = scmp.lt.s32.totalorder %s732, 31
      %s734 = scalar_select %p733, %s732, 31
      %s735 = smul.addr %s734, 8
      %s736 = scalar_lea.vmem %s4, %s735
      %s737 = smul.u32 16, %s17
      %p738 = scmp.lt.s32.totalorder %s737, 31
      %s739 = scalar_select %p738, %s737, 31
      %s740 = smul.addr %s739, 4
      %s741 = scalar_lea.vmem %s5, %s740
      // Predicated region
      $region37: #{graphsage_forward.6} parent=35 // pred_check
        %p742 = pneg %p124
      $region38: #{graphsage_forward.6} parent=35 // pred_check_branch
        %744 = sbr.rel (%p742) target = $region40
      $region39: #{graphsage_forward.6} parent=35 // pred_region
        %s745 = smul.u32 16, %s17
      $region40: #{graphsage_forward.6} parent=35 // pred_fallthru
        _
      // Predicated region
      $region41: #{graphsage_forward.6} parent=35 // pred_check
        %p746 = pneg %p150
      $region42: #{graphsage_forward.6} parent=35 // pred_check_branch
        %748 = sbr.rel (%p746) target = $region44
      $region43: #{graphsage_forward.6} parent=35 // pred_region
        %s749 = smul.u32 16, %s17
      $region44: #{graphsage_forward.6} parent=35 // pred_fallthru
        _
    $region36: #{graphsage_forward.6} parent=5 // pred_fallthru
      _
    %p750 = scmp.le.s32.totalorder 2, %s12
    // Predicated region
    $region45: #{graphsage_forward.6} parent=5 // pred_check
      %p751 = pneg %p750
    $region46: #{graphsage_forward.6} parent=5 // pred_check_branch
      %753 = sbr.rel (%p751) target = $region48
    $region47: #{graphsage_forward.6} parent=5 // pred_region
      %s754 = ssub.s32 %s12, 2
      // Predicated region
      $region49: #{graphsage_forward.6} parent=47 // pred_check
        %p755 = pneg %p130
      $region50: #{graphsage_forward.6} parent=47 // pred_check_branch
        %757 = sbr.rel (%p755) target = $region52
      $region51: #{graphsage_forward.6} parent=47 // pred_region
        %s758 = smul.u32 16, %s18
        %p759 = scmp.lt.s32.totalorder %s758, 31
        %s760 = scalar_select %p759, %s758, 31
        %s761 = smul.addr %s760, 8
        %s762 = scalar_lea.vmem %s4, %s761
      $region52: #{graphsage_forward.6} parent=47 // pred_fallthru
        _
      // Predicated region
      $region53: #{graphsage_forward.6} parent=47 // pred_check
        %p763 = pneg %p156
      $region54: #{graphsage_forward.6} parent=47 // pred_check_branch
        %765 = sbr.rel (%p763) target = $region56
      $region55: #{graphsage_forward.6} parent=47 // pred_region
        %s766 = smul.u32 16, %s18
        %p767 = scmp.lt.s32.totalorder %s766, 31
        %s768 = scalar_select %p767, %s766, 31
        %s769 = smul.addr %s768, 4
        %s770 = scalar_lea.vmem %s5, %s769
      $region56: #{graphsage_forward.6} parent=47 // pred_fallthru
        _
    $region48: #{graphsage_forward.6} parent=5 // pred_fallthru
      _
  $region6: #{graphsage_forward.6} parent=0 // loop_footer
    %s16 = sadd.s32 1, %s12
  $region7: #{graphsage_forward.6} parent=0 // loop_footer_branch
    %11 = sbr.rel target = $region3
  $region8: #{graphsage_forward.6} parent=0 // loop_exit
    _

// kernel: graphsage_forward.7
$region0: #{graphsage_forward.7}
  #allocation0 [shape = 'u32[]', space=smem, size = 0x4, offset = 0x4, fixed_abs, tag = 'smem constant byte address 0x4 - core index']
  #allocation1 [shape = 'u32[144,128]{1,0:T(1,128)}', space=vmem, size = 0x12000, scoped, tag = 'internal scratch']
  #allocation2 [shape = 'f32[128,128]{1,0:T(8,128)}', space=vmem, size = 0x10000, scoped, tag = 'scratch operand']
  %s0 = inlined_call_operand.vmem [shape: bf16[256,256], index: 0, kind: input, shape index: {}]
  %s1 = inlined_call_operand.vmem [shape: bf16[256,128], index: 1, kind: input, shape index: {}]
  %s2 = inlined_call_operand.vmem [shape: f32[256,128], index: 2, kind: input, shape index: {}]
  %s3 = inlined_call_operand.vmem [shape: bf16[256,128], index: 3, kind: output, shape index: {}]
  %s4 = sld [smem:[#allocation0]]
  $region94: #{graphsage_forward.7} parent=0
    _
  %s6 = ssub.s32 1, %s4
  %s7 = scalar_select 0, %s6, %s4
  $region1: #{graphsage_forward.7} parent=0
    #allocation3 [shape = 'u8[65536]{0}', space=vmem, size = 0x10000, scoped, tag = 'input window, operand 0']
    loop: start=0, step=1, limit=6
    $region2: #{graphsage_forward.7} parent=1 // loop_pre_header
      _
    $region3: #{graphsage_forward.7} parent=1 // loop_header
      %s9 = sphi 0, %s13
      %p10 = scmp.ge.s32.totalorder %s9, 6
      %s16 = sphi 0, %s28
      %s17 = sphi 0, %s24
      %s18 = sphi 0, %s16
      %s19 = sphi 0, %s17
      %s20 = sphi 0, %s18
      %s21 = sphi 0, %s19
      %s33 = sphi 0, %s35
      %s36 = sphi 0, %s33
      %s37 = sphi 0, %s36
      %s53 = sphi 0, %s37
      %s59 = sphi 0, %s61
      %s62 = sphi 0, %s59
      %s63 = sphi 0, %s62
      %s79 = sphi 0, %s63
      %s85 = sphi 0, %s87
      %s88 = sphi 0, %s85
      %s89 = sphi 0, %s88
      %s105 = sphi 0, %s89
      %s111 = sphi 0, %s113
      %s114 = sphi 0, %s111
      %s115 = sphi 0, %s114
      %s131 = sphi 0, %s115
    $region4: #{graphsage_forward.7} parent=1 // loop_header_branch
      %12 = sbr.rel (%p10) target = $region8
    $region5: #{graphsage_forward.7} parent=1 // loop_body
      %s14 = ssub.s32 %s9, 1
      %s15 = ssub.s32 %s9, 2
      %s22 = sadd.s32 1, %s17
      %p23 = scmp.ge.s32.totalorder %s22, 2
      %s24 = scalar_select %p23, 0, %s22
      %s25 = sadd.s32 1, %s16
      %s26 = scalar_select %p23, %s25, %s16
      %p27 = scmp.ge.s32.totalorder %s26, 2
      %s28 = scalar_select %p27, 0, %s26
      %s29 = ssub.s32 %s16, %s28
      %s30 = ssub.s32 %s17, %s24
      %s31 = sor.u32 %s29, %s30
      %p32 = scmp.eq.s32.totalorder %s31, 0
      %s34 = sadd.s32 %s33, 1
      %s35 = scalar_select %p32, %s33, %s34
      %p38 = pneg %p32
      %p39 = scmp.eq.s32.totalorder %s9, 3
      %p40 = por %p38, %p39
      %p41 = scmp.ne.s32.totalorder %s33, %s36
      %p42 = scmp.eq.s32.totalorder %s9, 0
      %p43 = por %p41, %p42
      %p44 = scmp.ne.s32.totalorder %s33, %s36
      %p45 = scmp.eq.s32.totalorder %s14, 3
      %p46 = por %p44, %p45
      %p47 = scmp.ne.s32.totalorder %s36, %s37
      %p48 = scmp.eq.s32.totalorder %s14, 0
      %p49 = por %p47, %p48
      %p50 = scmp.ne.s32.totalorder %s36, %s37
      %p51 = scmp.eq.s32.totalorder %s15, 3
      %p52 = por %p50, %p51
      %p54 = scmp.ne.s32.totalorder %s37, %s53
      %p55 = scmp.eq.s32.totalorder %s15, 0
      %p56 = por %p54, %p55
      %s57 = ssub.s32 %s17, %s24
      %p58 = scmp.eq.s32.totalorder %s57, 0
      %s60 = sadd.s32 %s59, 1
      %s61 = scalar_select %p58, %s59, %s60
      %p64 = pneg %p58
      %p65 = scmp.eq.s32.totalorder %s9, 3
      %p66 = por %p64, %p65
      %p67 = scmp.ne.s32.totalorder %s59, %s62
      %p68 = scmp.eq.s32.totalorder %s9, 0
      %p69 = por %p67, %p68
      %p70 = scmp.ne.s32.totalorder %s59, %s62
      %p71 = scmp.eq.s32.totalorder %s14, 3
      %p72 = por %p70, %p71
      %p73 = scmp.ne.s32.totalorder %s62, %s63
      %p74 = scmp.eq.s32.totalorder %s14, 0
      %p75 = por %p73, %p74
      %p76 = scmp.ne.s32.totalorder %s62, %s63
      %p77 = scmp.eq.s32.totalorder %s15, 3
      %p78 = por %p76, %p77
      %p80 = scmp.ne.s32.totalorder %s63, %s79
      %p81 = scmp.eq.s32.totalorder %s15, 0
      %p82 = por %p80, %p81
      %s83 = ssub.s32 %s16, %s28
      %p84 = scmp.eq.s32.totalorder %s83, 0
      %s86 = sadd.s32 %s85, 1
      %s87 = scalar_select %p84, %s85, %s86
      %p90 = pneg %p84
      %p91 = scmp.eq.s32.totalorder %s9, 3
      %p92 = por %p90, %p91
      %p93 = scmp.ne.s32.totalorder %s85, %s88
      %p94 = scmp.eq.s32.totalorder %s9, 0
      %p95 = por %p93, %p94
      %p96 = scmp.ne.s32.totalorder %s85, %s88
      %p97 = scmp.eq.s32.totalorder %s14, 3
      %p98 = por %p96, %p97
      %p99 = scmp.ne.s32.totalorder %s88, %s89
      %p100 = scmp.eq.s32.totalorder %s14, 0
      %p101 = por %p99, %p100
      %p102 = scmp.ne.s32.totalorder %s88, %s89
      %p103 = scmp.eq.s32.totalorder %s15, 3
      %p104 = por %p102, %p103
      %p106 = scmp.ne.s32.totalorder %s89, %s105
      %p107 = scmp.eq.s32.totalorder %s15, 0
      %p108 = por %p106, %p107
      %s109 = ssub.s32 %s16, %s28
      %p110 = scmp.eq.s32.totalorder %s109, 0
      %s112 = sadd.s32 %s111, 1
      %s113 = scalar_select %p110, %s111, %s112
      %p116 = pneg %p110
      %p117 = scmp.eq.s32.totalorder %s9, 3
      %p118 = por %p116, %p117
      %p119 = scmp.ne.s32.totalorder %s111, %s114
      %p120 = scmp.eq.s32.totalorder %s9, 0
      %p121 = por %p119, %p120
      %p122 = scmp.ne.s32.totalorder %s111, %s114
      %p123 = scmp.eq.s32.totalorder %s14, 3
      %p124 = por %p122, %p123
      %p125 = scmp.ne.s32.totalorder %s114, %s115
      %p126 = scmp.eq.s32.totalorder %s14, 0
      %p127 = por %p125, %p126
      %p128 = scmp.ne.s32.totalorder %s114, %s115
      %p129 = scmp.eq.s32.totalorder %s15, 3
      %p130 = por %p128, %p129
      %p132 = scmp.ne.s32.totalorder %s115, %s131
      %p133 = scmp.eq.s32.totalorder %s15, 0
      %p134 = por %p132, %p133
      %p135 = scmp.le.s32.totalorder 1, %s9
      %p136 = scmp.lt.s32.totalorder %s9, 5
      %p137 = pnand %p135, %p136
      %p138 = pneg %p137
      // Predicated region
      $region9: #{graphsage_forward.7} parent=5 // pred_check
        _
      $region10: #{graphsage_forward.7} parent=5 // pred_check_branch
        %140 = sbr.rel (%p137) target = $region12
      $region11: #{graphsage_forward.7} parent=5 // pred_region
        %s141 = ssub.s32 %s9, 1
      $region12: #{graphsage_forward.7} parent=5 // pred_fallthru
        _
      %p142 = scmp.lt.s32.totalorder %s9, 4
      // Predicated region
      $region13: #{graphsage_forward.7} parent=5 // pred_check
        %p143 = pneg %p142
      $region14: #{graphsage_forward.7} parent=5 // pred_check_branch
        %145 = sbr.rel (%p143) target = $region16
      $region15: #{graphsage_forward.7} parent=5 // pred_region
        // Predicated region
        $region17: #{graphsage_forward.7} parent=15 // pred_check
          %p146 = pneg %p43
        $region18: #{graphsage_forward.7} parent=15 // pred_check_branch
          %148 = sbr.rel (%p146) target = $region20
        $region19: #{graphsage_forward.7} parent=15 // pred_region
          %s149 = sand.u32 %s33, 1
          %s150 = sand.u32 %s33, 1
          %s151 = smul.addr %s150, 64
          %s152 = scalar_lea.vmem [#allocation3], %s151
          %s153 = smul.u32 16, %s16
          %s154 = smul.addr %s153, 2
          %s155 = sadd.s32 %s17, %s154
          %s156 = smul.addr %s155, 4
          %s157 = scalar_lea.vmem %s0, %s156
          // Predicated region
          $region21: #{graphsage_forward.7} parent=19 // pred_check
            _
          $region22: #{graphsage_forward.7} parent=19 // pred_check_branch
            %159 = sbr.rel (0) target = $region24
          $region23: #{graphsage_forward.7} parent=19 // pred_region
            // Predicated region
            $region25: #{graphsage_forward.7} parent=23 // pred_check
              _
            $region26: #{graphsage_forward.7} parent=23 // pred_check_branch
              %161 = sbr.rel target = $region28
            $region27: #{graphsage_forward.7} parent=23 // pred_region
              // Predicated region
              $region40: #{graphsage_forward.7} parent=27 // pred_check
                _
              $region41: #{graphsage_forward.7} parent=27 // pred_check_branch
                %206 = sbr.rel (0) target = $region43
              $region42: #{graphsage_forward.7} parent=27 // pred_region
                loop: start=0, step=1, limit=1
                $region44: #{graphsage_forward.7} parent=42 // loop_pre_header
                  _
                $region45: #{graphsage_forward.7} parent=42 // loop_header
                  %s208 = sphi 0, %s212
                  %p209 = scmp.ge.s32.totalorder %s208, 1
                  %s213 = sphi %s157, %s157
                  %s214 = sphi %s152, %s152
                $region46: #{graphsage_forward.7} parent=42 // loop_header_branch
                  %211 = sbr.rel (%p209) target = $region50
                $region47: #{graphsage_forward.7} parent=42 // loop_body
                  _
                $region48: #{graphsage_forward.7} parent=42 // loop_footer
                  %s212 = sadd.s32 1, %s208
                $region49: #{graphsage_forward.7} parent=42 // loop_footer_branch
                  %207 = sbr.rel target = $region45
                $region50: #{graphsage_forward.7} parent=42 // loop_exit
                  _
                loop: start=0, step=1, limit=1
                $region51: #{graphsage_forward.7} parent=42 // loop_pre_header
                  _
                $region52: #{graphsage_forward.7} parent=42 // loop_header
                  %s217 = sphi 0, %s221
                  %p218 = scmp.ge.s32.totalorder %s217, 1
                  %s222 = sphi %s157, %s157
                  %s223 = sphi %s152, %s152
                $region53: #{graphsage_forward.7} parent=42 // loop_header_branch
                  %220 = sbr.rel (%p218) target = $region57
                $region54: #{graphsage_forward.7} parent=42 // loop_body
                  %v224 = vld [vmem:[%s222] sm:$0xf]
                  %225 = vst [vmem:[%s223] sm:$0xf] %v224
                  %v226 = vld [vmem:[%s222 + $0x8] sm:$0xf]
                  %227 = vst [vmem:[%s223 + $0x4] sm:$0xf] %v226
                  %v228 = vld [vmem:[%s222 + $0x10] sm:$0xf]
                  %229 = vst [vmem:[%s223 + $0x8] sm:$0xf] %v228
                  %v230 = vld [vmem:[%s222 + $0x18] sm:$0xf]
                  %231 = vst [vmem:[%s223 + $0xc] sm:$0xf] %v230
                  %v232 = vld [vmem:[%s222 + $0x20] sm:$0xf]
                  %233 = vst [vmem:[%s223 + $0x10] sm:$0xf] %v232
                  %v234 = vld [vmem:[%s222 + $0x28] sm:$0xf]
                  %235 = vst [vmem:[%s223 + $0x14] sm:$0xf] %v234
                  %v236 = vld [vmem:[%s222 + $0x30] sm:$0xf]
                  %237 = vst [vmem:[%s223 + $0x18] sm:$0xf] %v236
                  %v238 = vld [vmem:[%s222 + $0x38] sm:$0xf]
                  %239 = vst [vmem:[%s223 + $0x1c] sm:$0xf] %v238
                  %v240 = vld [vmem:[%s222 + $0x40] sm:$0xf]
                  %241 = vst [vmem:[%s223 + $0x20] sm:$0xf] %v240
                  %v242 = vld [vmem:[%s222 + $0x48] sm:$0xf]
                  %243 = vst [vmem:[%s223 + $0x24] sm:$0xf] %v242
                  %v244 = vld [vmem:[%s222 + $0x50] sm:$0xf]
                  %245 = vst [vmem:[%s223 + $0x28] sm:$0xf] %v244
                  %v246 = vld [vmem:[%s222 + $0x58] sm:$0xf]
                  %247 = vst [vmem:[%s223 + $0x2c] sm:$0xf] %v246
                  %v248 = vld [vmem:[%s222 + $0x60] sm:$0xf]
                  %249 = vst [vmem:[%s223 + $0x30] sm:$0xf] %v248
                  %v250 = vld [vmem:[%s222 + $0x68] sm:$0xf]
                  %251 = vst [vmem:[%s223 + $0x34] sm:$0xf] %v250
                  %v252 = vld [vmem:[%s222 + $0x70] sm:$0xf]
                  %253 = vst [vmem:[%s223 + $0x38] sm:$0xf] %v252
                  %v254 = vld [vmem:[%s222 + $0x78] sm:$0xf]
                  %255 = vst [vmem:[%s223 + $0x3c] sm:$0xf] %v254
                $region55: #{graphsage_forward.7} parent=42 // loop_footer
                  %s221 = sadd.s32 1, %s217
                $region56: #{graphsage_forward.7} parent=42 // loop_footer_branch
                  %216 = sbr.rel target = $region52
                $region57: #{graphsage_forward.7} parent=42 // loop_exit
                  _
              $region43: #{graphsage_forward.7} parent=27 // pred_fallthru
                _
            $region28: #{graphsage_forward.7} parent=23 // pred_fallthru
              _
            // Predicated region
            $region29: #{graphsage_forward.7} parent=23 // pred_check
              _
            $region30: #{graphsage_forward.7} parent=23 // pred_check_branch
              %163 = sbr.rel (0) target = $region32
            $region31: #{graphsage_forward.7} parent=23 // pred_region
              loop: start=0, step=1, limit=1
              $region33: #{graphsage_forward.7} parent=31 // loop_pre_header
                _
              $region34: #{graphsage_forward.7} parent=31 // loop_header
                %s166 = sphi 0, %s170
                %p167 = scmp.ge.s32.totalorder %s166, 1
                %s171 = sphi %s157, %s157
                %s172 = sphi %s152, %s152
              $region35: #{graphsage_forward.7} parent=31 // loop_header_branch
                %169 = sbr.rel (%p167) target = $region39
              $region36: #{graphsage_forward.7} parent=31 // loop_body
                %v173 = vld [vmem:[%s171] sm:$0xf]
                %174 = vst [vmem:[%s172] sm:$0xf] %v173
                %v175 = vld [vmem:[%s171 + $0x8] sm:$0xf]
                %176 = vst [vmem:[%s172 + $0x4] sm:$0xf] %v175
                %v177 = vld [vmem:[%s171 + $0x10] sm:$0xf]
                %178 = vst [vmem:[%s172 + $0x8] sm:$0xf] %v177
                %v179 = vld [vmem:[%s171 + $0x18] sm:$0xf]
                %180 = vst [vmem:[%s172 + $0xc] sm:$0xf] %v179
                %v181 = vld [vmem:[%s171 + $0x20] sm:$0xf]
                %182 = vst [vmem:[%s172 + $0x10] sm:$0xf] %v181
                %v183 = vld [vmem:[%s171 + $0x28] sm:$0xf]
                %184 = vst [vmem:[%s172 + $0x14] sm:$0xf] %v183
                %v185 = vld [vmem:[%s171 + $0x30] sm:$0xf]
                %186 = vst [vmem:[%s172 + $0x18] sm:$0xf] %v185
                %v187 = vld [vmem:[%s171 + $0x38] sm:$0xf]
                %188 = vst [vmem:[%s172 + $0x1c] sm:$0xf] %v187
                %v189 = vld [vmem:[%s171 + $0x40] sm:$0xf]
                %190 = vst [vmem:[%s172 + $0x20] sm:$0xf] %v189
                %v191 = vld [vmem:[%s171 + $0x48] sm:$0xf]
                %192 = vst [vmem:[%s172 + $0x24] sm:$0xf] %v191
                %v193 = vld [vmem:[%s171 + $0x50] sm:$0xf]
                %194 = vst [vmem:[%s172 + $0x28] sm:$0xf] %v193
                %v195 = vld [vmem:[%s171 + $0x58] sm:$0xf]
                %196 = vst [vmem:[%s172 + $0x2c] sm:$0xf] %v195
                %v197 = vld [vmem:[%s171 + $0x60] sm:$0xf]
                %198 = vst [vmem:[%s172 + $0x30] sm:$0xf] %v197
                %v199 = vld [vmem:[%s171 + $0x68] sm:$0xf]
                %200 = vst [vmem:[%s172 + $0x34] sm:$0xf] %v199
                %v201 = vld [vmem:[%s171 + $0x70] sm:$0xf]
                %202 = vst [vmem:[%s172 + $0x38] sm:$0xf] %v201
                %v203 = vld [vmem:[%s171 + $0x78] sm:$0xf]
                %204 = vst [vmem:[%s172 + $0x3c] sm:$0xf] %v203
              $region37: #{graphsage_forward.7} parent=31 // loop_footer
                %s170 = sadd.s32 1, %s166
              $region38: #{graphsage_forward.7} parent=31 // loop_footer_branch
                %165 = sbr.rel target = $region34
              $region39: #{graphsage_forward.7} parent=31 // loop_exit
                _
            $region32: #{graphsage_forward.7} parent=23 // pred_fallthru
              _
          $region24: #{graphsage_forward.7} parent=19 // pred_fallthru
            _
          %256 = vnop
        $region20: #{graphsage_forward.7} parent=15 // pred_fallthru
          _
        // Predicated region
        $region58: #{graphsage_forward.7} parent=15 // pred_check
          %p257 = pneg %p69
        $region59: #{graphsage_forward.7} parent=15 // pred_check_branch
          %259 = sbr.rel (%p257) target = $region61
        $region60: #{graphsage_forward.7} parent=15 // pred_region
          %s260 = smul.u32 16, %s17
          %p261 = scmp.lt.s32.totalorder %s260, 31
          %s262 = scalar_select %p261, %s260, 31
          %s263 = smul.addr %s262, 4
          %s264 = scalar_lea.vmem %s1, %s263
          %s265 = smul.u32 16, %s17
        $region61: #{graphsage_forward.7} parent=15 // pred_fallthru
          _
        // Predicated region
        $region62: #{graphsage_forward.7} parent=15 // pred_check
          %p266 = pneg %p95
        $region63: #{graphsage_forward.7} parent=15 // pred_check_branch
          %268 = sbr.rel (%p266) target = $region65
        $region64: #{graphsage_forward.7} parent=15 // pred_region
          %s269 = smul.u32 16, %s16
          %p270 = scmp.lt.s32.totalorder %s269, 31
          %s271 = scalar_select %p270, %s269, 31
          %s272 = smul.addr %s271, 8
          %s273 = scalar_lea.vmem %s2, %s272
          %s274 = smul.u32 16, %s16
        $region65: #{graphsage_forward.7} parent=15 // pred_fallthru
          _
      $region16: #{graphsage_forward.7} parent=5 // pred_fallthru
        _
      %p275 = scmp.le.s32.totalorder 1, %s9
      %p276 = scmp.lt.s32.totalorder %s9, 5
      %p277 = pnand %p275, %p276
      %p278 = pneg %p277
      // Predicated region
      $region66: #{graphsage_forward.7} parent=5 // pred_check
        _
      $region67: #{graphsage_forward.7} parent=5 // pred_check_branch
        %280 = sbr.rel (%p277) target = $region69
      $region68: #{graphsage_forward.7} parent=5 // pred_region
        %s281 = ssub.s32 %s9, 1
        %s282 = sand.u32 %s36, 1
        %s283 = sand.u32 %s36, 1
        %s284 = smul.addr %s283, 64
        %s285 = scalar_lea.vmem [#allocation3], %s284
        // Predicated region
        $region70: #{graphsage_forward.7} parent=68 // pred_check
          %p286 = pneg %p49
        $region71: #{graphsage_forward.7} parent=68 // pred_check_branch
          %288 = sbr.rel (%p286) target = $region73
        $region72: #{graphsage_forward.7} parent=68 // pred_region
          _
        $region73: #{graphsage_forward.7} parent=68 // pred_fallthru
          _
        %s289 = sand.u32 %s36, 1
        %s290 = sand.u32 %s36, 1
        %s291 = smul.addr %s290, 64
        %s292 = scalar_lea.vmem [#allocation3], %s291
        %p293 = pneg %p49
        %p294 = pneg %p46
        %s295 = smul.u32 16, %s19
        %p296 = scmp.lt.s32.totalorder %s295, 31
        %s297 = scalar_select %p296, %s295, 31
        %s298 = smul.addr %s297, 4
        %s299 = scalar_lea.vmem %s1, %s298
        %p300 = pneg %p75
        %p301 = pneg %p72
        %s302 = smul.u32 16, %s18
        %p303 = scmp.lt.s32.totalorder %s302, 31
        %s304 = scalar_select %p303, %s302, 31
        %s305 = smul.addr %s304, 8
        %s306 = scalar_lea.vmem %s2, %s305
        %p307 = pneg %p101
        %p308 = pneg %p98
        %p309 = pneg %p127
        %p310 = pneg %p124
        %s311 = smul.u32 16, %s18
        %p312 = scmp.lt.s32.totalorder %s311, 31
        %s313 = scalar_select %p312, %s311, 31
        %s314 = smul.addr %s313, 4
        %s315 = scalar_lea.vmem %s3, %s314
        %s316 = smul.u32 16, %s18
        %s317 = smul.u32 16, %s19
        %p318 = scmp.lt.s32.totalorder %s317, 31
        %s319 = scalar_select %p318, %s317, 31
        %s320 = smul.addr %s319, 4
        %s321 = scalar_lea.vmem %s1, %s320
        %s322 = smul.u32 16, %s19
        %s323 = smul.u32 16, %s18
        %p324 = scmp.lt.s32.totalorder %s323, 31
        %s325 = scalar_select %p324, %s323, 31
        %s326 = smul.addr %s325, 8
        %s327 = scalar_lea.vmem %s2, %s326
        %s328 = smul.u32 16, %s18
        %s329 = smul.u32 16, %s18
        %p330 = scmp.lt.s32.totalorder %s329, 31
        %s331 = scalar_select %p330, %s329, 31
        %s332 = smul.addr %s331, 4
        %s333 = scalar_lea.vmem %s3, %s332
        %s334 = smul.u32 16, %s18
        %p336 = scmp.eq.s32.totalorder %s19, 0
        // Predicated region
        $region74: #{graphsage_forward.7} parent=68 // pred_check
          %p337 = pneg %p336
        $region75: #{graphsage_forward.7} parent=68 // pred_check_branch
          %339 = sbr.rel (%p337) target = $region77
        $region76: #{graphsage_forward.7} parent=68 // pred_region
          %v340 = vld [vmem:[%s327] sm:$0xff]
          %v341 = vld [vmem:[%s327 + $0x8] sm:$0xff]
          %v342 = vld [vmem:[%s327 + $0x10] sm:$0xff]
          %v343 = vld [vmem:[%s327 + $0x18] sm:$0xff]
          %v344 = vld [vmem:[%s327 + $0x20] sm:$0xff]
          %v345 = vld [vmem:[%s327 + $0x28] sm:$0xff]
          %v346 = vld [vmem:[%s327 + $0x30] sm:$0xff]
          %v347 = vld [vmem:[%s327 + $0x38] sm:$0xff]
          %v348 = vld [vmem:[%s327 + $0x40] sm:$0xff]
          %v349 = vld [vmem:[%s327 + $0x48] sm:$0xff]
          %v350 = vld [vmem:[%s327 + $0x50] sm:$0xff]
          %v351 = vld [vmem:[%s327 + $0x58] sm:$0xff]
          %v352 = vld [vmem:[%s327 + $0x60] sm:$0xff]
          %v353 = vld [vmem:[%s327 + $0x68] sm:$0xff]
          %v354 = vld [vmem:[%s327 + $0x70] sm:$0xff]
          %v355 = vld [vmem:[%s327 + $0x78] sm:$0xff]
          %356 = vst [vmem:[#allocation2] sm:$0xff] %v340
          %357 = vst [vmem:[#allocation2 + $0x8] sm:$0xff] %v341
          %358 = vst [vmem:[#allocation2 + $0x10] sm:$0xff] %v342
          %359 = vst [vmem:[#allocation2 + $0x18] sm:$0xff] %v343
          %360 = vst [vmem:[#allocation2 + $0x20] sm:$0xff] %v344
          %361 = vst [vmem:[#allocation2 + $0x28] sm:$0xff] %v345
          %362 = vst [vmem:[#allocation2 + $0x30] sm:$0xff] %v346
          %363 = vst [vmem:[#allocation2 + $0x38] sm:$0xff] %v347
          %364 = vst [vmem:[#allocation2 + $0x40] sm:$0xff] %v348
          %365 = vst [vmem:[#allocation2 + $0x48] sm:$0xff] %v349
          %366 = vst [vmem:[#allocation2 + $0x50] sm:$0xff] %v350
          %367 = vst [vmem:[#allocation2 + $0x58] sm:$0xff] %v351
          %368 = vst [vmem:[#allocation2 + $0x60] sm:$0xff] %v352
          %369 = vst [vmem:[#allocation2 + $0x68] sm:$0xff] %v353
          %370 = vst [vmem:[#allocation2 + $0x70] sm:$0xff] %v354
          %371 = vst [vmem:[#allocation2 + $0x78] sm:$0xff] %v355
        $region77: #{graphsage_forward.7} parent=68 // pred_fallthru
          _
        %v372 = vld [vmem:[#allocation2] sm:$0xff]
        %v373 = vld [vmem:[#allocation2 + $0x8] sm:$0xff]
        %v374 = vld [vmem:[#allocation2 + $0x10] sm:$0xff]
        %v375 = vld [vmem:[#allocation2 + $0x18] sm:$0xff]
        %v376 = vld [vmem:[#allocation2 + $0x20] sm:$0xff]
        %v377 = vld [vmem:[#allocation2 + $0x28] sm:$0xff]
        %v378 = vld [vmem:[#allocation2 + $0x30] sm:$0xff]
        %v379 = vld [vmem:[#allocation2 + $0x38] sm:$0xff]
        %v380 = vld [vmem:[#allocation2 + $0x40] sm:$0xff]
        %v381 = vld [vmem:[#allocation2 + $0x48] sm:$0xff]
        %v382 = vld [vmem:[#allocation2 + $0x50] sm:$0xff]
        %v383 = vld [vmem:[#allocation2 + $0x58] sm:$0xff]
        %v384 = vld [vmem:[#allocation2 + $0x60] sm:$0xff]
        %v385 = vld [vmem:[#allocation2 + $0x68] sm:$0xff]
        %v386 = vld [vmem:[#allocation2 + $0x70] sm:$0xff]
        %v387 = vld [vmem:[#allocation2 + $0x78] sm:$0xff]
        %v388 = vld [vmem:[%s285] sm:$0xf]
        %v389 = vld [vmem:[%s285 + $0x4] sm:$0xf]
        %v390 = vld [vmem:[%s285 + $0x8] sm:$0xf]
        %v391 = vld [vmem:[%s285 + $0xc] sm:$0xf]
        %v392 = vld [vmem:[%s285 + $0x10] sm:$0xf]
        %v393 = vld [vmem:[%s285 + $0x14] sm:$0xf]
        %v394 = vld [vmem:[%s285 + $0x18] sm:$0xf]
        %v395 = vld [vmem:[%s285 + $0x1c] sm:$0xf]
        %v396 = vld [vmem:[%s285 + $0x20] sm:$0xf]
        %v397 = vld [vmem:[%s285 + $0x24] sm:$0xf]
        %v398 = vld [vmem:[%s285 + $0x28] sm:$0xf]
        %v399 = vld [vmem:[%s285 + $0x2c] sm:$0xf]
        %v400 = vld [vmem:[%s285 + $0x30] sm:$0xf]
        %v401 = vld [vmem:[%s285 + $0x34] sm:$0xf]
        %v402 = vld [vmem:[%s285 + $0x38] sm:$0xf]
        %v403 = vld [vmem:[%s285 + $0x3c] sm:$0xf]
        %v404 = vld [vmem:[%s321] sm:$0xf]
        %v405 = vld [vmem:[%s321 + $0x4] sm:$0xf]
        %v406 = vld [vmem:[%s321 + $0x8] sm:$0xf]
        %v407 = vld [vmem:[%s321 + $0xc] sm:$0xf]
        %v408 = vld [vmem:[%s321 + $0x10] sm:$0xf]
        %v409 = vld [vmem:[%s321 + $0x14] sm:$0xf]
        %v410 = vld [vmem:[%s321 + $0x18] sm:$0xf]
        %v411 = vld [vmem:[%s321 + $0x1c] sm:$0xf]
        %v412 = vld [vmem:[%s321 + $0x20] sm:$0xf]
        %v413 = vld [vmem:[%s321 + $0x24] sm:$0xf]
        %v414 = vld [vmem:[%s321 + $0x28] sm:$0xf]
        %v415 = vld [vmem:[%s321 + $0x2c] sm:$0xf]
        %v416 = vld [vmem:[%s321 + $0x30] sm:$0xf]
        %v417 = vld [vmem:[%s321 + $0x34] sm:$0xf]
        %v418 = vld [vmem:[%s321 + $0x38] sm:$0xf]
        %v419 = vld [vmem:[%s321 + $0x3c] sm:$0xf]
        %v436 = vunpack.c.l.b16 %v388
        %v437 = vunpack.c.l.b16 %v389
        %v438 = vunpack.c.l.b16 %v390
        %v439 = vunpack.c.l.b16 %v391
        %v440 = vunpack.c.l.b16 %v392
        %v441 = vunpack.c.l.b16 %v393
        %v442 = vunpack.c.l.b16 %v394
        %v443 = vunpack.c.l.b16 %v395
        %v444 = vunpack.c.l.b16 %v396
        %v445 = vunpack.c.l.b16 %v397
        %v446 = vunpack.c.l.b16 %v398
        %v447 = vunpack.c.l.b16 %v399
        %v448 = vunpack.c.l.b16 %v400
        %v449 = vunpack.c.l.b16 %v401
        %v450 = vunpack.c.l.b16 %v402
        %v451 = vunpack.c.l.b16 %v403
        %v452 = vpack.c.b16 %v437, %v436
        %v453 = vpack.c.b16 %v439, %v438
        %v454 = vpack.c.b16 %v441, %v440
        %v455 = vpack.c.b16 %v443, %v442
        %v456 = vpack.c.b16 %v445, %v444
        %v457 = vpack.c.b16 %v447, %v446
        %v458 = vpack.c.b16 %v449, %v448
        %v459 = vpack.c.b16 %v451, %v450
        %v484 = vunpack.c.l.b16 %v404
        %v485 = vunpack.c.l.b16 %v405
        %v486 = vunpack.c.l.b16 %v406
        %v487 = vunpack.c.l.b16 %v407
        %v488 = vunpack.c.l.b16 %v408
        %v489 = vunpack.c.l.b16 %v409
        %v490 = vunpack.c.l.b16 %v410
        %v491 = vunpack.c.l.b16 %v411
        %v492 = vunpack.c.l.b16 %v412
        %v493 = vunpack.c.l.b16 %v413
        %v494 = vunpack.c.l.b16 %v414
        %v495 = vunpack.c.l.b16 %v415
        %v496 = vunpack.c.l.b16 %v416
        %v497 = vunpack.c.l.b16 %v417
        %v498 = vunpack.c.l.b16 %v418
        %v499 = vunpack.c.l.b16 %v419
        %v500 = vpack.c.b16 %v485, %v484
        %v501 = vpack.c.b16 %v487, %v486
        %v502 = vpack.c.b16 %v489, %v488
        %v503 = vpack.c.b16 %v491, %v490
        %v504 = vpack.c.b16 %v493, %v492
        %v505 = vpack.c.b16 %v495, %v494
        %v506 = vpack.c.b16 %v497, %v496
        %v507 = vpack.c.b16 %v499, %v498
        %516 = vmatprep.subr.bf16.mxu0 0
        %517 = vmatpush1.bf16.msra.mxu0 %v500
        %518 = vmatprep.subr.bf16.mxu0 0
        %519 = vmatpush1.bf16.msra.mxu0 %v501
        %520 = vmatprep.subr.bf16.mxu0 0
        %521 = vmatpush1.bf16.msra.mxu0 %v502
        %522 = vmatprep.subr.bf16.mxu0 0
        %523 = vmatpush1.bf16.msra.mxu0 %v503
        %524 = vmatprep.subr.bf16.mxu0 0
        %525 = vmatpush1.bf16.msra.mxu0 %v504
        %526 = vmatprep.subr.bf16.mxu0 0
        %527 = vmatpush1.bf16.msra.mxu0 %v505
        %528 = vmatprep.subr.bf16.mxu0 0
        %529 = vmatpush1.bf16.msra.mxu0 %v506
        %530 = vmatprep.subr.bf16.mxu0 0
        %531 = vmatpush1.bf16.msra.mxu0 %v507
        %532 = vmatprep.subr.bf16.mxu0 0
        %533 = vmatpush1.bf16.msra.mxu0 0
        %534 = vmatprep.subr.bf16.mxu0 0
        %535 = vmatpush1.bf16.msra.mxu0 0
        %536 = vmatprep.subr.bf16.mxu0 0
        %537 = vmatpush1.bf16.msra.mxu0 0
        %538 = vmatprep.subr.bf16.mxu0 0
        %539 = vmatpush1.bf16.msra.mxu0 0
        %540 = vmatprep.subr.bf16.mxu0 0
        %541 = vmatpush1.bf16.msra.mxu0 0
        %542 = vmatprep.subr.bf16.mxu0 0
        %543 = vmatpush1.bf16.msra.mxu0 0
        %544 = vmatprep.subr.bf16.mxu0 0
        %545 = vmatpush1.bf16.msra.mxu0 0
        %546 = vmatprep.subr.bf16.mxu0 0
        %547 = vmatpush1.bf16.msra.mxu0 0
        %548 = vmatprep.mubr.bf16.mxu0 0
        %549 = vmatmul.mubr.bf16.gmra.mrb[0].mxu0 %v452
        %v550 = vpop.f32.mrb[0].mxu0
        %v551 = vadd.f32 0.0, %v550
        %v552 = vpop.f32.mrb[0].mxu0
        %v553 = vpop.f32.mrb[0].mxu0
        %v554 = vadd.f32 0.0, %v553
        %v555 = vpop.f32.mrb[0].mxu0
        %556 = vmatprep.mubr.bf16.mxu0 0
        %557 = vmatmul.mubr.bf16.gmra.mrb[0].mxu0 %v453
        %v558 = vpop.f32.mrb[0].mxu0
        %v559 = vadd.f32 0.0, %v558
        %v560 = vpop.f32.mrb[0].mxu0
        %v561 = vpop.f32.mrb[0].mxu0
        %v562 = vadd.f32 0.0, %v561
        %v563 = vpop.f32.mrb[0].mxu0
        %564 = vmatprep.mubr.bf16.mxu0 0
        %565 = vmatmul.mubr.bf16.gmra.mrb[0].mxu0 %v454
        %v566 = vpop.f32.mrb[0].mxu0
        %v567 = vadd.f32 0.0, %v566
        %v568 = vpop.f32.mrb[0].mxu0
        %v569 = vpop.f32.mrb[0].mxu0
        %v570 = vadd.f32 0.0, %v569
        %v571 = vpop.f32.mrb[0].mxu0
        %572 = vmatprep.mubr.bf16.mxu0 0
        %573 = vmatmul.mubr.bf16.gmra.mrb[0].mxu0 %v455
        %v574 = vpop.f32.mrb[0].mxu0
        %v575 = vadd.f32 0.0, %v574
        %v576 = vpop.f32.mrb[0].mxu0
        %v577 = vpop.f32.mrb[0].mxu0
        %v578 = vadd.f32 0.0, %v577
        %v579 = vpop.f32.mrb[0].mxu0
        %580 = vmatprep.mubr.bf16.mxu0 0
        %581 = vmatmul.mubr.bf16.gmra.mrb[0].mxu0 %v456
        %v582 = vpop.f32.mrb[0].mxu0
        %v583 = vadd.f32 0.0, %v582
        %v584 = vpop.f32.mrb[0].mxu0
        %v585 = vpop.f32.mrb[0].mxu0
        %v586 = vadd.f32 0.0, %v585
        %v587 = vpop.f32.mrb[0].mxu0
        %588 = vmatprep.mubr.bf16.mxu0 0
        %589 = vmatmul.mubr.bf16.gmra.mrb[0].mxu0 %v457
        %v590 = vpop.f32.mrb[0].mxu0
        %v591 = vadd.f32 0.0, %v590
        %v592 = vpop.f32.mrb[0].mxu0
        %v593 = vpop.f32.mrb[0].mxu0
        %v594 = vadd.f32 0.0, %v593
        %v595 = vpop.f32.mrb[0].mxu0
        %596 = vmatprep.mubr.bf16.mxu0 0
        %597 = vmatmul.mubr.bf16.gmra.mrb[0].mxu0 %v458
        %v598 = vpop.f32.mrb[0].mxu0
        %v599 = vadd.f32 0.0, %v598
        %v600 = vpop.f32.mrb[0].mxu0
        %v601 = vpop.f32.mrb[0].mxu0
        %v602 = vadd.f32 0.0, %v601
        %v603 = vpop.f32.mrb[0].mxu0
        %604 = vmatprep.mubr.bf16.mxu0 0
        %605 = vmatmul.mubr.bf16.gmra.mrb[0].mxu0 %v459
        %v606 = vpop.f32.mrb[0].mxu0
        %v607 = vadd.f32 0.0, %v606
        %v608 = vpop.f32.mrb[0].mxu0
        %v609 = vpop.f32.mrb[0].mxu0
        %v610 = vadd.f32 0.0, %v609
        %v611 = vpop.f32.mrb[0].mxu0
        %612 = vdwg.mxu0
        %v613 = vadd.f32 %v372, %v551
        %v614 = vadd.f32 %v373, %v554
        %v615 = vadd.f32 %v374, %v559
        %v616 = vadd.f32 %v375, %v562
        %v617 = vadd.f32 %v376, %v567
        %v618 = vadd.f32 %v377, %v570
        %v619 = vadd.f32 %v378, %v575
        %v620 = vadd.f32 %v379, %v578
        %v621 = vadd.f32 %v380, %v583
        %v622 = vadd.f32 %v381, %v586
        %v623 = vadd.f32 %v382, %v591
        %v624 = vadd.f32 %v383, %v594
        %v625 = vadd.f32 %v384, %v599
        %v626 = vadd.f32 %v385, %v602
        %v627 = vadd.f32 %v386, %v607
        %v628 = vadd.f32 %v387, %v610
        %629 = vst [vmem:[#allocation2] sm:$0xff] %v613
        %630 = vst [vmem:[#allocation2 + $0x8] sm:$0xff] %v614
        %631 = vst [vmem:[#allocation2 + $0x10] sm:$0xff] %v615
        %632 = vst [vmem:[#allocation2 + $0x18] sm:$0xff] %v616
        %633 = vst [vmem:[#allocation2 + $0x20] sm:$0xff] %v617
        %634 = vst [vmem:[#allocation2 + $0x28] sm:$0xff] %v618
        %635 = vst [vmem:[#allocation2 + $0x30] sm:$0xff] %v619
        %636 = vst [vmem:[#allocation2 + $0x38] sm:$0xff] %v620
        %637 = vst [vmem:[#allocation2 + $0x40] sm:$0xff] %v621
        %638 = vst [vmem:[#allocation2 + $0x48] sm:$0xff] %v622
        %639 = vst [vmem:[#allocation2 + $0x50] sm:$0xff] %v623
        %640 = vst [vmem:[#allocation2 + $0x58] sm:$0xff] %v624
        %641 = vst [vmem:[#allocation2 + $0x60] sm:$0xff] %v625
        %642 = vst [vmem:[#allocation2 + $0x68] sm:$0xff] %v626
        %643 = vst [vmem:[#allocation2 + $0x70] sm:$0xff] %v627
        %644 = vst [vmem:[#allocation2 + $0x78] sm:$0xff] %v628
        %p645 = scmp.eq.s32.totalorder %s19, 1
        // Predicated region
        $region78: #{graphsage_forward.7} parent=68 // pred_check
          %p646 = pneg %p645
        $region79: #{graphsage_forward.7} parent=68 // pred_check_branch
          %648 = sbr.rel (%p646) target = $region81
        $region80: #{graphsage_forward.7} parent=68 // pred_region
          %v649 = vld [vmem:[#allocation2] sm:$0xff]
          %v650 = vld [vmem:[#allocation2 + $0x8] sm:$0xff]
          %v651 = vld [vmem:[#allocation2 + $0x10] sm:$0xff]
          %v652 = vld [vmem:[#allocation2 + $0x18] sm:$0xff]
          %v653 = vld [vmem:[#allocation2 + $0x20] sm:$0xff]
          %v654 = vld [vmem:[#allocation2 + $0x28] sm:$0xff]
          %v655 = vld [vmem:[#allocation2 + $0x30] sm:$0xff]
          %v656 = vld [vmem:[#allocation2 + $0x38] sm:$0xff]
          %v657 = vld [vmem:[#allocation2 + $0x40] sm:$0xff]
          %v658 = vld [vmem:[#allocation2 + $0x48] sm:$0xff]
          %v659 = vld [vmem:[#allocation2 + $0x50] sm:$0xff]
          %v660 = vld [vmem:[#allocation2 + $0x58] sm:$0xff]
          %v661 = vld [vmem:[#allocation2 + $0x60] sm:$0xff]
          %v662 = vld [vmem:[#allocation2 + $0x68] sm:$0xff]
          %v663 = vld [vmem:[#allocation2 + $0x70] sm:$0xff]
          %v664 = vld [vmem:[#allocation2 + $0x78] sm:$0xff]
          %v665 = vmax.f32 %v649, 0.0
          %v666 = vmax.f32 %v650, 0.0
          %v667 = vmax.f32 %v651, 0.0
          %v668 = vmax.f32 %v652, 0.0
          %v669 = vmax.f32 %v653, 0.0
          %v670 = vmax.f32 %v654, 0.0
          %v671 = vmax.f32 %v655, 0.0
          %v672 = vmax.f32 %v656, 0.0
          %v673 = vmax.f32 %v657, 0.0
          %v674 = vmax.f32 %v658, 0.0
          %v675 = vmax.f32 %v659, 0.0
          %v676 = vmax.f32 %v660, 0.0
          %v677 = vmax.f32 %v661, 0.0
          %v678 = vmax.f32 %v662, 0.0
          %v679 = vmax.f32 %v663, 0.0
          %v680 = vmax.f32 %v664, 0.0
          %v681 = vpack.c.bf16 %v666, %v665
          %v682 = vpack.c.bf16 %v668, %v667
          %v683 = vpack.c.bf16 %v670, %v669
          %v684 = vpack.c.bf16 %v672, %v671
          %v685 = vpack.c.bf16 %v674, %v673
          %v686 = vpack.c.bf16 %v676, %v675
          %v687 = vpack.c.bf16 %v678, %v677
          %v688 = vpack.c.bf16 %v680, %v679
          %v697 = vunpack.c.l.b16 %v681
          %v698 = vunpack.c.h.b16 %v681
          %v699 = vunpack.c.l.b16 %v682
          %v700 = vunpack.c.h.b16 %v682
          %v701 = vunpack.c.l.b16 %v683
          %v702 = vunpack.c.h.b16 %v683
          %v703 = vunpack.c.l.b16 %v684
          %v704 = vunpack.c.h.b16 %v684
          %v705 = vunpack.c.l.b16 %v685
          %v706 = vunpack.c.h.b16 %v685
          %v707 = vunpack.c.l.b16 %v686
          %v708 = vunpack.c.h.b16 %v686
          %v709 = vunpack.c.l.b16 %v687
          %v710 = vunpack.c.h.b16 %v687
          %v711 = vunpack.c.l.b16 %v688
          %v712 = vunpack.c.h.b16 %v688
          %v713 = vpack.c.b16 %v697, %v697
          %v714 = vpack.c.b16 %v698, %v698
          %v715 = vpack.c.b16 %v699, %v699
          %v716 = vpack.c.b16 %v700, %v700
          %v717 = vpack.c.b16 %v701, %v701
          %v718 = vpack.c.b16 %v702, %v702
          %v719 = vpack.c.b16 %v703, %v703
          %v720 = vpack.c.b16 %v704, %v704
          %v721 = vpack.c.b16 %v705, %v705
          %v722 = vpack.c.b16 %v706, %v706
          %v723 = vpack.c.b16 %v707, %v707
          %v724 = vpack.c.b16 %v708, %v708
          %v725 = vpack.c.b16 %v709, %v709
          %v726 = vpack.c.b16 %v710, %v710
          %v727 = vpack.c.b16 %v711, %v711
          %v728 = vpack.c.b16 %v712, %v712
          %745 = vst [vmem:[%s333] sm:$0xf] %v713
          %746 = vst [vmem:[%s333 + $0x4] sm:$0xf] %v714
          %747 = vst [vmem:[%s333 + $0x8] sm:$0xf] %v715
          %748 = vst [vmem:[%s333 + $0xc] sm:$0xf] %v716
          %749 = vst [vmem:[%s333 + $0x10] sm:$0xf] %v717
          %750 = vst [vmem:[%s333 + $0x14] sm:$0xf] %v718
          %751 = vst [vmem:[%s333 + $0x18] sm:$0xf] %v719
          %752 = vst [vmem:[%s333 + $0x1c] sm:$0xf] %v720
          %753 = vst [vmem:[%s333 + $0x20] sm:$0xf] %v721
          %754 = vst [vmem:[%s333 + $0x24] sm:$0xf] %v722
          %755 = vst [vmem:[%s333 + $0x28] sm:$0xf] %v723
          %756 = vst [vmem:[%s333 + $0x2c] sm:$0xf] %v724
          %757 = vst [vmem:[%s333 + $0x30] sm:$0xf] %v725
          %758 = vst [vmem:[%s333 + $0x34] sm:$0xf] %v726
          %759 = vst [vmem:[%s333 + $0x38] sm:$0xf] %v727
          %760 = vst [vmem:[%s333 + $0x3c] sm:$0xf] %v728
        $region81: #{graphsage_forward.7} parent=68 // pred_fallthru
          _
        %s761 = smul.u32 16, %s18
        %p762 = scmp.lt.s32.totalorder %s761, 31
        %s763 = scalar_select %p762, %s761, 31
        %s764 = smul.addr %s763, 4
        %s765 = scalar_lea.vmem %s3, %s764
        // Predicated region
        $region82: #{graphsage_forward.7} parent=68 // pred_check
          %p766 = pneg %p124
        $region83: #{graphsage_forward.7} parent=68 // pred_check_branch
          %768 = sbr.rel (%p766) target = $region85
        $region84: #{graphsage_forward.7} parent=68 // pred_region
          %s769 = smul.u32 16, %s18
        $region85: #{graphsage_forward.7} parent=68 // pred_fallthru
          _
      $region69: #{graphsage_forward.7} parent=5 // pred_fallthru
        _
      %p770 = scmp.le.s32.totalorder 2, %s9
      // Predicated region
      $region86: #{graphsage_forward.7} parent=5 // pred_check
        %p771 = pneg %p770
      $region87: #{graphsage_forward.7} parent=5 // pred_check_branch
        %773 = sbr.rel (%p771) target = $region89
      $region88: #{graphsage_forward.7} parent=5 // pred_region
        %s774 = ssub.s32 %s9, 2
        // Predicated region
        $region90: #{graphsage_forward.7} parent=88 // pred_check
          %p775 = pneg %p130
        $region91: #{graphsage_forward.7} parent=88 // pred_check_branch
          %777 = sbr.rel (%p775) target = $region93
        $region92: #{graphsage_forward.7} parent=88 // pred_region
          %s778 = smul.u32 16, %s20
          %p779 = scmp.lt.s32.totalorder %s778, 31
          %s780 = scalar_select %p779, %s778, 31
          %s781 = smul.addr %s780, 4
          %s782 = scalar_lea.vmem %s3, %s781
        $region93: #{graphsage_forward.7} parent=88 // pred_fallthru
          _
      $region89: #{graphsage_forward.7} parent=5 // pred_fallthru
        _
    $region6: #{graphsage_forward.7} parent=1 // loop_footer
      %s13 = sadd.s32 1, %s9
    $region7: #{graphsage_forward.7} parent=1 // loop_footer_branch
      %8 = sbr.rel target = $region3
    $region8: #{graphsage_forward.7} parent=1 // loop_exit
      _

// kernel: graphsage_forward.11
$region0: #{graphsage_forward.11}
  #allocation0 [shape = 'u32[]', space=smem, size = 0x4, offset = 0x4, fixed_abs, tag = 'smem constant byte address 0x4 - core index']
  #allocation1 [shape = 'u32[144,128]{1,0:T(1,128)}', space=vmem, size = 0x12000, scoped, tag = 'internal scratch']
  #allocation2 [shape = 'f32[128,128]{1,0:T(8,128)}', space=vmem, size = 0x10000, scoped, tag = 'scratch operand']
  %s0 = inlined_call_operand.vmem [shape: bf16[256,256], index: 0, kind: input, shape index: {}]
  %s1 = inlined_call_operand.vmem [shape: bf16[256,128], index: 1, kind: input, shape index: {}]
  %s2 = inlined_call_operand.vmem [shape: f32[256,128], index: 2, kind: input, shape index: {}]
  %s3 = inlined_call_operand.vmem [shape: f32[256,128], index: 3, kind: output, shape index: {}]
  %s4 = sld [smem:[#allocation0]]
  $region94: #{graphsage_forward.11} parent=0
    _
  %s6 = ssub.s32 1, %s4
  %s7 = scalar_select 0, %s6, %s4
  $region1: #{graphsage_forward.11} parent=0
    #allocation3 [shape = 'u8[65536]{0}', space=vmem, size = 0x10000, scoped, tag = 'input window, operand 0']
    loop: start=0, step=1, limit=6
    $region2: #{graphsage_forward.11} parent=1 // loop_pre_header
      _
    $region3: #{graphsage_forward.11} parent=1 // loop_header
      %s9 = sphi 0, %s13
      %p10 = scmp.ge.s32.totalorder %s9, 6
      %s16 = sphi 0, %s28
      %s17 = sphi 0, %s24
      %s18 = sphi 0, %s16
      %s19 = sphi 0, %s17
      %s20 = sphi 0, %s18
      %s21 = sphi 0, %s19
      %s33 = sphi 0, %s35
      %s36 = sphi 0, %s33
      %s37 = sphi 0, %s36
      %s53 = sphi 0, %s37
      %s59 = sphi 0, %s61
      %s62 = sphi 0, %s59
      %s63 = sphi 0, %s62
      %s79 = sphi 0, %s63
      %s85 = sphi 0, %s87
      %s88 = sphi 0, %s85
      %s89 = sphi 0, %s88
      %s105 = sphi 0, %s89
      %s111 = sphi 0, %s113
      %s114 = sphi 0, %s111
      %s115 = sphi 0, %s114
      %s131 = sphi 0, %s115
    $region4: #{graphsage_forward.11} parent=1 // loop_header_branch
      %12 = sbr.rel (%p10) target = $region8
    $region5: #{graphsage_forward.11} parent=1 // loop_body
      %s14 = ssub.s32 %s9, 1
      %s15 = ssub.s32 %s9, 2
      %s22 = sadd.s32 1, %s17
      %p23 = scmp.ge.s32.totalorder %s22, 2
      %s24 = scalar_select %p23, 0, %s22
      %s25 = sadd.s32 1, %s16
      %s26 = scalar_select %p23, %s25, %s16
      %p27 = scmp.ge.s32.totalorder %s26, 2
      %s28 = scalar_select %p27, 0, %s26
      %s29 = ssub.s32 %s16, %s28
      %s30 = ssub.s32 %s17, %s24
      %s31 = sor.u32 %s29, %s30
      %p32 = scmp.eq.s32.totalorder %s31, 0
      %s34 = sadd.s32 %s33, 1
      %s35 = scalar_select %p32, %s33, %s34
      %p38 = pneg %p32
      %p39 = scmp.eq.s32.totalorder %s9, 3
      %p40 = por %p38, %p39
      %p41 = scmp.ne.s32.totalorder %s33, %s36
      %p42 = scmp.eq.s32.totalorder %s9, 0
      %p43 = por %p41, %p42
      %p44 = scmp.ne.s32.totalorder %s33, %s36
      %p45 = scmp.eq.s32.totalorder %s14, 3
      %p46 = por %p44, %p45
      %p47 = scmp.ne.s32.totalorder %s36, %s37
      %p48 = scmp.eq.s32.totalorder %s14, 0
      %p49 = por %p47, %p48
      %p50 = scmp.ne.s32.totalorder %s36, %s37
      %p51 = scmp.eq.s32.totalorder %s15, 3
      %p52 = por %p50, %p51
      %p54 = scmp.ne.s32.totalorder %s37, %s53
      %p55 = scmp.eq.s32.totalorder %s15, 0
      %p56 = por %p54, %p55
      %s57 = ssub.s32 %s17, %s24
      %p58 = scmp.eq.s32.totalorder %s57, 0
      %s60 = sadd.s32 %s59, 1
      %s61 = scalar_select %p58, %s59, %s60
      %p64 = pneg %p58
      %p65 = scmp.eq.s32.totalorder %s9, 3
      %p66 = por %p64, %p65
      %p67 = scmp.ne.s32.totalorder %s59, %s62
      %p68 = scmp.eq.s32.totalorder %s9, 0
      %p69 = por %p67, %p68
      %p70 = scmp.ne.s32.totalorder %s59, %s62
      %p71 = scmp.eq.s32.totalorder %s14, 3
      %p72 = por %p70, %p71
      %p73 = scmp.ne.s32.totalorder %s62, %s63
      %p74 = scmp.eq.s32.totalorder %s14, 0
      %p75 = por %p73, %p74
      %p76 = scmp.ne.s32.totalorder %s62, %s63
      %p77 = scmp.eq.s32.totalorder %s15, 3
      %p78 = por %p76, %p77
      %p80 = scmp.ne.s32.totalorder %s63, %s79
      %p81 = scmp.eq.s32.totalorder %s15, 0
      %p82 = por %p80, %p81
      %s83 = ssub.s32 %s16, %s28
      %p84 = scmp.eq.s32.totalorder %s83, 0
      %s86 = sadd.s32 %s85, 1
      %s87 = scalar_select %p84, %s85, %s86
      %p90 = pneg %p84
      %p91 = scmp.eq.s32.totalorder %s9, 3
      %p92 = por %p90, %p91
      %p93 = scmp.ne.s32.totalorder %s85, %s88
      %p94 = scmp.eq.s32.totalorder %s9, 0
      %p95 = por %p93, %p94
      %p96 = scmp.ne.s32.totalorder %s85, %s88
      %p97 = scmp.eq.s32.totalorder %s14, 3
      %p98 = por %p96, %p97
      %p99 = scmp.ne.s32.totalorder %s88, %s89
      %p100 = scmp.eq.s32.totalorder %s14, 0
      %p101 = por %p99, %p100
      %p102 = scmp.ne.s32.totalorder %s88, %s89
      %p103 = scmp.eq.s32.totalorder %s15, 3
      %p104 = por %p102, %p103
      %p106 = scmp.ne.s32.totalorder %s89, %s105
      %p107 = scmp.eq.s32.totalorder %s15, 0
      %p108 = por %p106, %p107
      %s109 = ssub.s32 %s16, %s28
      %p110 = scmp.eq.s32.totalorder %s109, 0
      %s112 = sadd.s32 %s111, 1
      %s113 = scalar_select %p110, %s111, %s112
      %p116 = pneg %p110
      %p117 = scmp.eq.s32.totalorder %s9, 3
      %p118 = por %p116, %p117
      %p119 = scmp.ne.s32.totalorder %s111, %s114
      %p120 = scmp.eq.s32.totalorder %s9, 0
      %p121 = por %p119, %p120
      %p122 = scmp.ne.s32.totalorder %s111, %s114
      %p123 = scmp.eq.s32.totalorder %s14, 3
      %p124 = por %p122, %p123
      %p125 = scmp.ne.s32.totalorder %s114, %s115
      %p126 = scmp.eq.s32.totalorder %s14, 0
      %p127 = por %p125, %p126
      %p128 = scmp.ne.s32.totalorder %s114, %s115
      %p129 = scmp.eq.s32.totalorder %s15, 3
      %p130 = por %p128, %p129
      %p132 = scmp.ne.s32.totalorder %s115, %s131
      %p133 = scmp.eq.s32.totalorder %s15, 0
      %p134 = por %p132, %p133
      %p135 = scmp.le.s32.totalorder 1, %s9
      %p136 = scmp.lt.s32.totalorder %s9, 5
      %p137 = pnand %p135, %p136
      %p138 = pneg %p137
      // Predicated region
      $region9: #{graphsage_forward.11} parent=5 // pred_check
        _
      $region10: #{graphsage_forward.11} parent=5 // pred_check_branch
        %140 = sbr.rel (%p137) target = $region12
      $region11: #{graphsage_forward.11} parent=5 // pred_region
        %s141 = ssub.s32 %s9, 1
      $region12: #{graphsage_forward.11} parent=5 // pred_fallthru
        _
      %p142 = scmp.lt.s32.totalorder %s9, 4
      // Predicated region
      $region13: #{graphsage_forward.11} parent=5 // pred_check
        %p143 = pneg %p142
      $region14: #{graphsage_forward.11} parent=5 // pred_check_branch
        %145 = sbr.rel (%p143) target = $region16
      $region15: #{graphsage_forward.11} parent=5 // pred_region
        // Predicated region
        $region17: #{graphsage_forward.11} parent=15 // pred_check
          %p146 = pneg %p43
        $region18: #{graphsage_forward.11} parent=15 // pred_check_branch
          %148 = sbr.rel (%p146) target = $region20
        $region19: #{graphsage_forward.11} parent=15 // pred_region
          %s149 = sand.u32 %s33, 1
          %s150 = sand.u32 %s33, 1
          %s151 = smul.addr %s150, 64
          %s152 = scalar_lea.vmem [#allocation3], %s151
          %s153 = smul.u32 16, %s16
          %s154 = smul.addr %s153, 2
          %s155 = sadd.s32 %s17, %s154
          %s156 = smul.addr %s155, 4
          %s157 = scalar_lea.vmem %s0, %s156
          // Predicated region
          $region21: #{graphsage_forward.11} parent=19 // pred_check
            _
          $region22: #{graphsage_forward.11} parent=19 // pred_check_branch
            %159 = sbr.rel (0) target = $region24
          $region23: #{graphsage_forward.11} parent=19 // pred_region
            // Predicated region
            $region25: #{graphsage_forward.11} parent=23 // pred_check
              _
            $region26: #{graphsage_forward.11} parent=23 // pred_check_branch
              %161 = sbr.rel target = $region28
            $region27: #{graphsage_forward.11} parent=23 // pred_region
              // Predicated region
              $region40: #{graphsage_forward.11} parent=27 // pred_check
                _
              $region41: #{graphsage_forward.11} parent=27 // pred_check_branch
                %206 = sbr.rel (0) target = $region43
              $region42: #{graphsage_forward.11} parent=27 // pred_region
                loop: start=0, step=1, limit=1
                $region44: #{graphsage_forward.11} parent=42 // loop_pre_header
                  _
                $region45: #{graphsage_forward.11} parent=42 // loop_header
                  %s208 = sphi 0, %s212
                  %p209 = scmp.ge.s32.totalorder %s208, 1
                  %s213 = sphi %s157, %s157
                  %s214 = sphi %s152, %s152
                $region46: #{graphsage_forward.11} parent=42 // loop_header_branch
                  %211 = sbr.rel (%p209) target = $region50
                $region47: #{graphsage_forward.11} parent=42 // loop_body
                  _
                $region48: #{graphsage_forward.11} parent=42 // loop_footer
                  %s212 = sadd.s32 1, %s208
                $region49: #{graphsage_forward.11} parent=42 // loop_footer_branch
                  %207 = sbr.rel target = $region45
                $region50: #{graphsage_forward.11} parent=42 // loop_exit
                  _
                loop: start=0, step=1, limit=1
                $region51: #{graphsage_forward.11} parent=42 // loop_pre_header
                  _
                $region52: #{graphsage_forward.11} parent=42 // loop_header
                  %s217 = sphi 0, %s221
                  %p218 = scmp.ge.s32.totalorder %s217, 1
                  %s222 = sphi %s157, %s157
                  %s223 = sphi %s152, %s152
                $region53: #{graphsage_forward.11} parent=42 // loop_header_branch
                  %220 = sbr.rel (%p218) target = $region57
                $region54: #{graphsage_forward.11} parent=42 // loop_body
                  %v224 = vld [vmem:[%s222] sm:$0xf]
                  %225 = vst [vmem:[%s223] sm:$0xf] %v224
                  %v226 = vld [vmem:[%s222 + $0x8] sm:$0xf]
                  %227 = vst [vmem:[%s223 + $0x4] sm:$0xf] %v226
                  %v228 = vld [vmem:[%s222 + $0x10] sm:$0xf]
                  %229 = vst [vmem:[%s223 + $0x8] sm:$0xf] %v228
                  %v230 = vld [vmem:[%s222 + $0x18] sm:$0xf]
                  %231 = vst [vmem:[%s223 + $0xc] sm:$0xf] %v230
                  %v232 = vld [vmem:[%s222 + $0x20] sm:$0xf]
                  %233 = vst [vmem:[%s223 + $0x10] sm:$0xf] %v232
                  %v234 = vld [vmem:[%s222 + $0x28] sm:$0xf]
                  %235 = vst [vmem:[%s223 + $0x14] sm:$0xf] %v234
                  %v236 = vld [vmem:[%s222 + $0x30] sm:$0xf]
                  %237 = vst [vmem:[%s223 + $0x18] sm:$0xf] %v236
                  %v238 = vld [vmem:[%s222 + $0x38] sm:$0xf]
                  %239 = vst [vmem:[%s223 + $0x1c] sm:$0xf] %v238
                  %v240 = vld [vmem:[%s222 + $0x40] sm:$0xf]
                  %241 = vst [vmem:[%s223 + $0x20] sm:$0xf] %v240
                  %v242 = vld [vmem:[%s222 + $0x48] sm:$0xf]
                  %243 = vst [vmem:[%s223 + $0x24] sm:$0xf] %v242
                  %v244 = vld [vmem:[%s222 + $0x50] sm:$0xf]
                  %245 = vst [vmem:[%s223 + $0x28] sm:$0xf] %v244
                  %v246 = vld [vmem:[%s222 + $0x58] sm:$0xf]
                  %247 = vst [vmem:[%s223 + $0x2c] sm:$0xf] %v246
                  %v248 = vld [vmem:[%s222 + $0x60] sm:$0xf]
                  %249 = vst [vmem:[%s223 + $0x30] sm:$0xf] %v248
                  %v250 = vld [vmem:[%s222 + $0x68] sm:$0xf]
                  %251 = vst [vmem:[%s223 + $0x34] sm:$0xf] %v250
                  %v252 = vld [vmem:[%s222 + $0x70] sm:$0xf]
                  %253 = vst [vmem:[%s223 + $0x38] sm:$0xf] %v252
                  %v254 = vld [vmem:[%s222 + $0x78] sm:$0xf]
                  %255 = vst [vmem:[%s223 + $0x3c] sm:$0xf] %v254
                $region55: #{graphsage_forward.11} parent=42 // loop_footer
                  %s221 = sadd.s32 1, %s217
                $region56: #{graphsage_forward.11} parent=42 // loop_footer_branch
                  %216 = sbr.rel target = $region52
                $region57: #{graphsage_forward.11} parent=42 // loop_exit
                  _
              $region43: #{graphsage_forward.11} parent=27 // pred_fallthru
                _
            $region28: #{graphsage_forward.11} parent=23 // pred_fallthru
              _
            // Predicated region
            $region29: #{graphsage_forward.11} parent=23 // pred_check
              _
            $region30: #{graphsage_forward.11} parent=23 // pred_check_branch
              %163 = sbr.rel (0) target = $region32
            $region31: #{graphsage_forward.11} parent=23 // pred_region
              loop: start=0, step=1, limit=1
              $region33: #{graphsage_forward.11} parent=31 // loop_pre_header
                _
              $region34: #{graphsage_forward.11} parent=31 // loop_header
                %s166 = sphi 0, %s170
                %p167 = scmp.ge.s32.totalorder %s166, 1
                %s171 = sphi %s157, %s157
                %s172 = sphi %s152, %s152
              $region35: #{graphsage_forward.11} parent=31 // loop_header_branch
                %169 = sbr.rel (%p167) target = $region39
              $region36: #{graphsage_forward.11} parent=31 // loop_body
                %v173 = vld [vmem:[%s171] sm:$0xf]
                %174 = vst [vmem:[%s172] sm:$0xf] %v173
                %v175 = vld [vmem:[%s171 + $0x8] sm:$0xf]
                %176 = vst [vmem:[%s172 + $0x4] sm:$0xf] %v175
                %v177 = vld [vmem:[%s171 + $0x10] sm:$0xf]
                %178 = vst [vmem:[%s172 + $0x8] sm:$0xf] %v177
                %v179 = vld [vmem:[%s171 + $0x18] sm:$0xf]
                %180 = vst [vmem:[%s172 + $0xc] sm:$0xf] %v179
                %v181 = vld [vmem:[%s171 + $0x20] sm:$0xf]
                %182 = vst [vmem:[%s172 + $0x10] sm:$0xf] %v181
                %v183 = vld [vmem:[%s171 + $0x28] sm:$0xf]
                %184 = vst [vmem:[%s172 + $0x14] sm:$0xf] %v183
                %v185 = vld [vmem:[%s171 + $0x30] sm:$0xf]
                %186 = vst [vmem:[%s172 + $0x18] sm:$0xf] %v185
                %v187 = vld [vmem:[%s171 + $0x38] sm:$0xf]
                %188 = vst [vmem:[%s172 + $0x1c] sm:$0xf] %v187
                %v189 = vld [vmem:[%s171 + $0x40] sm:$0xf]
                %190 = vst [vmem:[%s172 + $0x20] sm:$0xf] %v189
                %v191 = vld [vmem:[%s171 + $0x48] sm:$0xf]
                %192 = vst [vmem:[%s172 + $0x24] sm:$0xf] %v191
                %v193 = vld [vmem:[%s171 + $0x50] sm:$0xf]
                %194 = vst [vmem:[%s172 + $0x28] sm:$0xf] %v193
                %v195 = vld [vmem:[%s171 + $0x58] sm:$0xf]
                %196 = vst [vmem:[%s172 + $0x2c] sm:$0xf] %v195
                %v197 = vld [vmem:[%s171 + $0x60] sm:$0xf]
                %198 = vst [vmem:[%s172 + $0x30] sm:$0xf] %v197
                %v199 = vld [vmem:[%s171 + $0x68] sm:$0xf]
                %200 = vst [vmem:[%s172 + $0x34] sm:$0xf] %v199
                %v201 = vld [vmem:[%s171 + $0x70] sm:$0xf]
                %202 = vst [vmem:[%s172 + $0x38] sm:$0xf] %v201
                %v203 = vld [vmem:[%s171 + $0x78] sm:$0xf]
                %204 = vst [vmem:[%s172 + $0x3c] sm:$0xf] %v203
              $region37: #{graphsage_forward.11} parent=31 // loop_footer
                %s170 = sadd.s32 1, %s166
              $region38: #{graphsage_forward.11} parent=31 // loop_footer_branch
                %165 = sbr.rel target = $region34
              $region39: #{graphsage_forward.11} parent=31 // loop_exit
                _
            $region32: #{graphsage_forward.11} parent=23 // pred_fallthru
              _
          $region24: #{graphsage_forward.11} parent=19 // pred_fallthru
            _
          %256 = vnop
        $region20: #{graphsage_forward.11} parent=15 // pred_fallthru
          _
        // Predicated region
        $region58: #{graphsage_forward.11} parent=15 // pred_check
          %p257 = pneg %p69
        $region59: #{graphsage_forward.11} parent=15 // pred_check_branch
          %259 = sbr.rel (%p257) target = $region61
        $region60: #{graphsage_forward.11} parent=15 // pred_region
          %s260 = smul.u32 16, %s17
          %p261 = scmp.lt.s32.totalorder %s260, 31
          %s262 = scalar_select %p261, %s260, 31
          %s263 = smul.addr %s262, 4
          %s264 = scalar_lea.vmem %s1, %s263
          %s265 = smul.u32 16, %s17
        $region61: #{graphsage_forward.11} parent=15 // pred_fallthru
          _
        // Predicated region
        $region62: #{graphsage_forward.11} parent=15 // pred_check
          %p266 = pneg %p95
        $region63: #{graphsage_forward.11} parent=15 // pred_check_branch
          %268 = sbr.rel (%p266) target = $region65
        $region64: #{graphsage_forward.11} parent=15 // pred_region
          %s269 = smul.u32 16, %s16
          %p270 = scmp.lt.s32.totalorder %s269, 31
          %s271 = scalar_select %p270, %s269, 31
          %s272 = smul.addr %s271, 8
          %s273 = scalar_lea.vmem %s2, %s272
          %s274 = smul.u32 16, %s16
        $region65: #{graphsage_forward.11} parent=15 // pred_fallthru
          _
      $region16: #{graphsage_forward.11} parent=5 // pred_fallthru
        _
      %p275 = scmp.le.s32.totalorder 1, %s9
      %p276 = scmp.lt.s32.totalorder %s9, 5
      %p277 = pnand %p275, %p276
      %p278 = pneg %p277
      // Predicated region
      $region66: #{graphsage_forward.11} parent=5 // pred_check
        _
      $region67: #{graphsage_forward.11} parent=5 // pred_check_branch
        %280 = sbr.rel (%p277) target = $region69
      $region68: #{graphsage_forward.11} parent=5 // pred_region
        %s281 = ssub.s32 %s9, 1
        %s282 = sand.u32 %s36, 1
        %s283 = sand.u32 %s36, 1
        %s284 = smul.addr %s283, 64
        %s285 = scalar_lea.vmem [#allocation3], %s284
        // Predicated region
        $region70: #{graphsage_forward.11} parent=68 // pred_check
          %p286 = pneg %p49
        $region71: #{graphsage_forward.11} parent=68 // pred_check_branch
          %288 = sbr.rel (%p286) target = $region73
        $region72: #{graphsage_forward.11} parent=68 // pred_region
          _
        $region73: #{graphsage_forward.11} parent=68 // pred_fallthru
          _
        %s289 = sand.u32 %s36, 1
        %s290 = sand.u32 %s36, 1
        %s291 = smul.addr %s290, 64
        %s292 = scalar_lea.vmem [#allocation3], %s291
        %p293 = pneg %p49
        %p294 = pneg %p46
        %s295 = smul.u32 16, %s19
        %p296 = scmp.lt.s32.totalorder %s295, 31
        %s297 = scalar_select %p296, %s295, 31
        %s298 = smul.addr %s297, 4
        %s299 = scalar_lea.vmem %s1, %s298
        %p300 = pneg %p75
        %p301 = pneg %p72
        %s302 = smul.u32 16, %s18
        %p303 = scmp.lt.s32.totalorder %s302, 31
        %s304 = scalar_select %p303, %s302, 31
        %s305 = smul.addr %s304, 8
        %s306 = scalar_lea.vmem %s2, %s305
        %p307 = pneg %p101
        %p308 = pneg %p98
        %p309 = pneg %p127
        %p310 = pneg %p124
        %s311 = smul.u32 16, %s18
        %p312 = scmp.lt.s32.totalorder %s311, 31
        %s313 = scalar_select %p312, %s311, 31
        %s314 = smul.addr %s313, 8
        %s315 = scalar_lea.vmem %s3, %s314
        %s316 = smul.u32 16, %s18
        %s317 = smul.u32 16, %s19
        %p318 = scmp.lt.s32.totalorder %s317, 31
        %s319 = scalar_select %p318, %s317, 31
        %s320 = smul.addr %s319, 4
        %s321 = scalar_lea.vmem %s1, %s320
        %s322 = smul.u32 16, %s19
        %s323 = smul.u32 16, %s18
        %p324 = scmp.lt.s32.totalorder %s323, 31
        %s325 = scalar_select %p324, %s323, 31
        %s326 = smul.addr %s325, 8
        %s327 = scalar_lea.vmem %s2, %s326
        %s328 = smul.u32 16, %s18
        %s329 = smul.u32 16, %s18
        %p330 = scmp.lt.s32.totalorder %s329, 31
        %s331 = scalar_select %p330, %s329, 31
        %s332 = smul.addr %s331, 8
        %s333 = scalar_lea.vmem %s3, %s332
        %s334 = smul.u32 16, %s18
        %p336 = scmp.eq.s32.totalorder %s19, 0
        // Predicated region
        $region74: #{graphsage_forward.11} parent=68 // pred_check
          %p337 = pneg %p336
        $region75: #{graphsage_forward.11} parent=68 // pred_check_branch
          %339 = sbr.rel (%p337) target = $region77
        $region76: #{graphsage_forward.11} parent=68 // pred_region
          %v340 = vld [vmem:[%s327] sm:$0xff]
          %v341 = vld [vmem:[%s327 + $0x8] sm:$0xff]
          %v342 = vld [vmem:[%s327 + $0x10] sm:$0xff]
          %v343 = vld [vmem:[%s327 + $0x18] sm:$0xff]
          %v344 = vld [vmem:[%s327 + $0x20] sm:$0xff]
          %v345 = vld [vmem:[%s327 + $0x28] sm:$0xff]
          %v346 = vld [vmem:[%s327 + $0x30] sm:$0xff]
          %v347 = vld [vmem:[%s327 + $0x38] sm:$0xff]
          %v348 = vld [vmem:[%s327 + $0x40] sm:$0xff]
          %v349 = vld [vmem:[%s327 + $0x48] sm:$0xff]
          %v350 = vld [vmem:[%s327 + $0x50] sm:$0xff]
          %v351 = vld [vmem:[%s327 + $0x58] sm:$0xff]
          %v352 = vld [vmem:[%s327 + $0x60] sm:$0xff]
          %v353 = vld [vmem:[%s327 + $0x68] sm:$0xff]
          %v354 = vld [vmem:[%s327 + $0x70] sm:$0xff]
          %v355 = vld [vmem:[%s327 + $0x78] sm:$0xff]
          %356 = vst [vmem:[#allocation2] sm:$0xff] %v340
          %357 = vst [vmem:[#allocation2 + $0x8] sm:$0xff] %v341
          %358 = vst [vmem:[#allocation2 + $0x10] sm:$0xff] %v342
          %359 = vst [vmem:[#allocation2 + $0x18] sm:$0xff] %v343
          %360 = vst [vmem:[#allocation2 + $0x20] sm:$0xff] %v344
          %361 = vst [vmem:[#allocation2 + $0x28] sm:$0xff] %v345
          %362 = vst [vmem:[#allocation2 + $0x30] sm:$0xff] %v346
          %363 = vst [vmem:[#allocation2 + $0x38] sm:$0xff] %v347
          %364 = vst [vmem:[#allocation2 + $0x40] sm:$0xff] %v348
          %365 = vst [vmem:[#allocation2 + $0x48] sm:$0xff] %v349
          %366 = vst [vmem:[#allocation2 + $0x50] sm:$0xff] %v350
          %367 = vst [vmem:[#allocation2 + $0x58] sm:$0xff] %v351
          %368 = vst [vmem:[#allocation2 + $0x60] sm:$0xff] %v352
          %369 = vst [vmem:[#allocation2 + $0x68] sm:$0xff] %v353
          %370 = vst [vmem:[#allocation2 + $0x70] sm:$0xff] %v354
          %371 = vst [vmem:[#allocation2 + $0x78] sm:$0xff] %v355
        $region77: #{graphsage_forward.11} parent=68 // pred_fallthru
          _
        %v372 = vld [vmem:[#allocation2] sm:$0xff]
        %v373 = vld [vmem:[#allocation2 + $0x8] sm:$0xff]
        %v374 = vld [vmem:[#allocation2 + $0x10] sm:$0xff]
        %v375 = vld [vmem:[#allocation2 + $0x18] sm:$0xff]
        %v376 = vld [vmem:[#allocation2 + $0x20] sm:$0xff]
        %v377 = vld [vmem:[#allocation2 + $0x28] sm:$0xff]
        %v378 = vld [vmem:[#allocation2 + $0x30] sm:$0xff]
        %v379 = vld [vmem:[#allocation2 + $0x38] sm:$0xff]
        %v380 = vld [vmem:[#allocation2 + $0x40] sm:$0xff]
        %v381 = vld [vmem:[#allocation2 + $0x48] sm:$0xff]
        %v382 = vld [vmem:[#allocation2 + $0x50] sm:$0xff]
        %v383 = vld [vmem:[#allocation2 + $0x58] sm:$0xff]
        %v384 = vld [vmem:[#allocation2 + $0x60] sm:$0xff]
        %v385 = vld [vmem:[#allocation2 + $0x68] sm:$0xff]
        %v386 = vld [vmem:[#allocation2 + $0x70] sm:$0xff]
        %v387 = vld [vmem:[#allocation2 + $0x78] sm:$0xff]
        %v388 = vld [vmem:[%s285] sm:$0xf]
        %v389 = vld [vmem:[%s285 + $0x4] sm:$0xf]
        %v390 = vld [vmem:[%s285 + $0x8] sm:$0xf]
        %v391 = vld [vmem:[%s285 + $0xc] sm:$0xf]
        %v392 = vld [vmem:[%s285 + $0x10] sm:$0xf]
        %v393 = vld [vmem:[%s285 + $0x14] sm:$0xf]
        %v394 = vld [vmem:[%s285 + $0x18] sm:$0xf]
        %v395 = vld [vmem:[%s285 + $0x1c] sm:$0xf]
        %v396 = vld [vmem:[%s285 + $0x20] sm:$0xf]
        %v397 = vld [vmem:[%s285 + $0x24] sm:$0xf]
        %v398 = vld [vmem:[%s285 + $0x28] sm:$0xf]
        %v399 = vld [vmem:[%s285 + $0x2c] sm:$0xf]
        %v400 = vld [vmem:[%s285 + $0x30] sm:$0xf]
        %v401 = vld [vmem:[%s285 + $0x34] sm:$0xf]
        %v402 = vld [vmem:[%s285 + $0x38] sm:$0xf]
        %v403 = vld [vmem:[%s285 + $0x3c] sm:$0xf]
        %v404 = vld [vmem:[%s321] sm:$0xf]
        %v405 = vld [vmem:[%s321 + $0x4] sm:$0xf]
        %v406 = vld [vmem:[%s321 + $0x8] sm:$0xf]
        %v407 = vld [vmem:[%s321 + $0xc] sm:$0xf]
        %v408 = vld [vmem:[%s321 + $0x10] sm:$0xf]
        %v409 = vld [vmem:[%s321 + $0x14] sm:$0xf]
        %v410 = vld [vmem:[%s321 + $0x18] sm:$0xf]
        %v411 = vld [vmem:[%s321 + $0x1c] sm:$0xf]
        %v412 = vld [vmem:[%s321 + $0x20] sm:$0xf]
        %v413 = vld [vmem:[%s321 + $0x24] sm:$0xf]
        %v414 = vld [vmem:[%s321 + $0x28] sm:$0xf]
        %v415 = vld [vmem:[%s321 + $0x2c] sm:$0xf]
        %v416 = vld [vmem:[%s321 + $0x30] sm:$0xf]
        %v417 = vld [vmem:[%s321 + $0x34] sm:$0xf]
        %v418 = vld [vmem:[%s321 + $0x38] sm:$0xf]
        %v419 = vld [vmem:[%s321 + $0x3c] sm:$0xf]
        %v436 = vunpack.c.l.b16 %v388
        %v437 = vunpack.c.l.b16 %v389
        %v438 = vunpack.c.l.b16 %v390
        %v439 = vunpack.c.l.b16 %v391
        %v440 = vunpack.c.l.b16 %v392
        %v441 = vunpack.c.l.b16 %v393
        %v442 = vunpack.c.l.b16 %v394
        %v443 = vunpack.c.l.b16 %v395
        %v444 = vunpack.c.l.b16 %v396
        %v445 = vunpack.c.l.b16 %v397
        %v446 = vunpack.c.l.b16 %v398
        %v447 = vunpack.c.l.b16 %v399
        %v448 = vunpack.c.l.b16 %v400
        %v449 = vunpack.c.l.b16 %v401
        %v450 = vunpack.c.l.b16 %v402
        %v451 = vunpack.c.l.b16 %v403
        %v452 = vpack.c.b16 %v437, %v436
        %v453 = vpack.c.b16 %v439, %v438
        %v454 = vpack.c.b16 %v441, %v440
        %v455 = vpack.c.b16 %v443, %v442
        %v456 = vpack.c.b16 %v445, %v444
        %v457 = vpack.c.b16 %v447, %v446
        %v458 = vpack.c.b16 %v449, %v448
        %v459 = vpack.c.b16 %v451, %v450
        %v484 = vunpack.c.l.b16 %v404
        %v485 = vunpack.c.l.b16 %v405
        %v486 = vunpack.c.l.b16 %v406
        %v487 = vunpack.c.l.b16 %v407
        %v488 = vunpack.c.l.b16 %v408
        %v489 = vunpack.c.l.b16 %v409
        %v490 = vunpack.c.l.b16 %v410
        %v491 = vunpack.c.l.b16 %v411
        %v492 = vunpack.c.l.b16 %v412
        %v493 = vunpack.c.l.b16 %v413
        %v494 = vunpack.c.l.b16 %v414
        %v495 = vunpack.c.l.b16 %v415
        %v496 = vunpack.c.l.b16 %v416
        %v497 = vunpack.c.l.b16 %v417
        %v498 = vunpack.c.l.b16 %v418
        %v499 = vunpack.c.l.b16 %v419
        %v500 = vpack.c.b16 %v485, %v484
        %v501 = vpack.c.b16 %v487, %v486
        %v502 = vpack.c.b16 %v489, %v488
        %v503 = vpack.c.b16 %v491, %v490
        %v504 = vpack.c.b16 %v493, %v492
        %v505 = vpack.c.b16 %v495, %v494
        %v506 = vpack.c.b16 %v497, %v496
        %v507 = vpack.c.b16 %v499, %v498
        %516 = vmatprep.subr.bf16.mxu0 0
        %517 = vmatpush1.bf16.msra.mxu0 %v500
        %518 = vmatprep.subr.bf16.mxu0 0
        %519 = vmatpush1.bf16.msra.mxu0 %v501
        %520 = vmatprep.subr.bf16.mxu0 0
        %521 = vmatpush1.bf16.msra.mxu0 %v502
        %522 = vmatprep.subr.bf16.mxu0 0
        %523 = vmatpush1.bf16.msra.mxu0 %v503
        %524 = vmatprep.subr.bf16.mxu0 0
        %525 = vmatpush1.bf16.msra.mxu0 %v504
        %526 = vmatprep.subr.bf16.mxu0 0
        %527 = vmatpush1.bf16.msra.mxu0 %v505
        %528 = vmatprep.subr.bf16.mxu0 0
        %529 = vmatpush1.bf16.msra.mxu0 %v506
        %530 = vmatprep.subr.bf16.mxu0 0
        %531 = vmatpush1.bf16.msra.mxu0 %v507
        %532 = vmatprep.subr.bf16.mxu0 0
        %533 = vmatpush1.bf16.msra.mxu0 0
        %534 = vmatprep.subr.bf16.mxu0 0
        %535 = vmatpush1.bf16.msra.mxu0 0
        %536 = vmatprep.subr.bf16.mxu0 0
        %537 = vmatpush1.bf16.msra.mxu0 0
        %538 = vmatprep.subr.bf16.mxu0 0
        %539 = vmatpush1.bf16.msra.mxu0 0
        %540 = vmatprep.subr.bf16.mxu0 0
        %541 = vmatpush1.bf16.msra.mxu0 0
        %542 = vmatprep.subr.bf16.mxu0 0
        %543 = vmatpush1.bf16.msra.mxu0 0
        %544 = vmatprep.subr.bf16.mxu0 0
        %545 = vmatpush1.bf16.msra.mxu0 0
        %546 = vmatprep.subr.bf16.mxu0 0
        %547 = vmatpush1.bf16.msra.mxu0 0
        %548 = vmatprep.mubr.bf16.mxu0 0
        %549 = vmatmul.mubr.bf16.gmra.mrb[0].mxu0 %v452
        %v550 = vpop.f32.mrb[0].mxu0
        %v551 = vadd.f32 0.0, %v550
        %v552 = vpop.f32.mrb[0].mxu0
        %v553 = vpop.f32.mrb[0].mxu0
        %v554 = vadd.f32 0.0, %v553
        %v555 = vpop.f32.mrb[0].mxu0
        %556 = vmatprep.mubr.bf16.mxu0 0
        %557 = vmatmul.mubr.bf16.gmra.mrb[0].mxu0 %v453
        %v558 = vpop.f32.mrb[0].mxu0
        %v559 = vadd.f32 0.0, %v558
        %v560 = vpop.f32.mrb[0].mxu0
        %v561 = vpop.f32.mrb[0].mxu0
        %v562 = vadd.f32 0.0, %v561
        %v563 = vpop.f32.mrb[0].mxu0
        %564 = vmatprep.mubr.bf16.mxu0 0
        %565 = vmatmul.mubr.bf16.gmra.mrb[0].mxu0 %v454
        %v566 = vpop.f32.mrb[0].mxu0
        %v567 = vadd.f32 0.0, %v566
        %v568 = vpop.f32.mrb[0].mxu0
        %v569 = vpop.f32.mrb[0].mxu0
        %v570 = vadd.f32 0.0, %v569
        %v571 = vpop.f32.mrb[0].mxu0
        %572 = vmatprep.mubr.bf16.mxu0 0
        %573 = vmatmul.mubr.bf16.gmra.mrb[0].mxu0 %v455
        %v574 = vpop.f32.mrb[0].mxu0
        %v575 = vadd.f32 0.0, %v574
        %v576 = vpop.f32.mrb[0].mxu0
        %v577 = vpop.f32.mrb[0].mxu0
        %v578 = vadd.f32 0.0, %v577
        %v579 = vpop.f32.mrb[0].mxu0
        %580 = vmatprep.mubr.bf16.mxu0 0
        %581 = vmatmul.mubr.bf16.gmra.mrb[0].mxu0 %v456
        %v582 = vpop.f32.mrb[0].mxu0
        %v583 = vadd.f32 0.0, %v582
        %v584 = vpop.f32.mrb[0].mxu0
        %v585 = vpop.f32.mrb[0].mxu0
        %v586 = vadd.f32 0.0, %v585
        %v587 = vpop.f32.mrb[0].mxu0
        %588 = vmatprep.mubr.bf16.mxu0 0
        %589 = vmatmul.mubr.bf16.gmra.mrb[0].mxu0 %v457
        %v590 = vpop.f32.mrb[0].mxu0
        %v591 = vadd.f32 0.0, %v590
        %v592 = vpop.f32.mrb[0].mxu0
        %v593 = vpop.f32.mrb[0].mxu0
        %v594 = vadd.f32 0.0, %v593
        %v595 = vpop.f32.mrb[0].mxu0
        %596 = vmatprep.mubr.bf16.mxu0 0
        %597 = vmatmul.mubr.bf16.gmra.mrb[0].mxu0 %v458
        %v598 = vpop.f32.mrb[0].mxu0
        %v599 = vadd.f32 0.0, %v598
        %v600 = vpop.f32.mrb[0].mxu0
        %v601 = vpop.f32.mrb[0].mxu0
        %v602 = vadd.f32 0.0, %v601
        %v603 = vpop.f32.mrb[0].mxu0
        %604 = vmatprep.mubr.bf16.mxu0 0
        %605 = vmatmul.mubr.bf16.gmra.mrb[0].mxu0 %v459
        %v606 = vpop.f32.mrb[0].mxu0
        %v607 = vadd.f32 0.0, %v606
        %v608 = vpop.f32.mrb[0].mxu0
        %v609 = vpop.f32.mrb[0].mxu0
        %v610 = vadd.f32 0.0, %v609
        %v611 = vpop.f32.mrb[0].mxu0
        %612 = vdwg.mxu0
        %v613 = vadd.f32 %v372, %v551
        %v614 = vadd.f32 %v373, %v554
        %v615 = vadd.f32 %v374, %v559
        %v616 = vadd.f32 %v375, %v562
        %v617 = vadd.f32 %v376, %v567
        %v618 = vadd.f32 %v377, %v570
        %v619 = vadd.f32 %v378, %v575
        %v620 = vadd.f32 %v379, %v578
        %v621 = vadd.f32 %v380, %v583
        %v622 = vadd.f32 %v381, %v586
        %v623 = vadd.f32 %v382, %v591
        %v624 = vadd.f32 %v383, %v594
        %v625 = vadd.f32 %v384, %v599
        %v626 = vadd.f32 %v385, %v602
        %v627 = vadd.f32 %v386, %v607
        %v628 = vadd.f32 %v387, %v610
        %629 = vst [vmem:[#allocation2] sm:$0xff] %v613
        %630 = vst [vmem:[#allocation2 + $0x8] sm:$0xff] %v614
        %631 = vst [vmem:[#allocation2 + $0x10] sm:$0xff] %v615
        %632 = vst [vmem:[#allocation2 + $0x18] sm:$0xff] %v616
        %633 = vst [vmem:[#allocation2 + $0x20] sm:$0xff] %v617
        %634 = vst [vmem:[#allocation2 + $0x28] sm:$0xff] %v618
        %635 = vst [vmem:[#allocation2 + $0x30] sm:$0xff] %v619
        %636 = vst [vmem:[#allocation2 + $0x38] sm:$0xff] %v620
        %637 = vst [vmem:[#allocation2 + $0x40] sm:$0xff] %v621
        %638 = vst [vmem:[#allocation2 + $0x48] sm:$0xff] %v622
        %639 = vst [vmem:[#allocation2 + $0x50] sm:$0xff] %v623
        %640 = vst [vmem:[#allocation2 + $0x58] sm:$0xff] %v624
        %641 = vst [vmem:[#allocation2 + $0x60] sm:$0xff] %v625
        %642 = vst [vmem:[#allocation2 + $0x68] sm:$0xff] %v626
        %643 = vst [vmem:[#allocation2 + $0x70] sm:$0xff] %v627
        %644 = vst [vmem:[#allocation2 + $0x78] sm:$0xff] %v628
        %p645 = scmp.eq.s32.totalorder %s19, 1
        // Predicated region
        $region78: #{graphsage_forward.11} parent=68 // pred_check
          %p646 = pneg %p645
        $region79: #{graphsage_forward.11} parent=68 // pred_check_branch
          %648 = sbr.rel (%p646) target = $region81
        $region80: #{graphsage_forward.11} parent=68 // pred_region
          %v649 = vld [vmem:[#allocation2] sm:$0xff]
          %v650 = vld [vmem:[#allocation2 + $0x8] sm:$0xff]
          %v651 = vld [vmem:[#allocation2 + $0x10] sm:$0xff]
          %v652 = vld [vmem:[#allocation2 + $0x18] sm:$0xff]
          %v653 = vld [vmem:[#allocation2 + $0x20] sm:$0xff]
          %v654 = vld [vmem:[#allocation2 + $0x28] sm:$0xff]
          %v655 = vld [vmem:[#allocation2 + $0x30] sm:$0xff]
          %v656 = vld [vmem:[#allocation2 + $0x38] sm:$0xff]
          %v657 = vld [vmem:[#allocation2 + $0x40] sm:$0xff]
          %v658 = vld [vmem:[#allocation2 + $0x48] sm:$0xff]
          %v659 = vld [vmem:[#allocation2 + $0x50] sm:$0xff]
          %v660 = vld [vmem:[#allocation2 + $0x58] sm:$0xff]
          %v661 = vld [vmem:[#allocation2 + $0x60] sm:$0xff]
          %v662 = vld [vmem:[#allocation2 + $0x68] sm:$0xff]
          %v663 = vld [vmem:[#allocation2 + $0x70] sm:$0xff]
          %v664 = vld [vmem:[#allocation2 + $0x78] sm:$0xff]
          %v665 = vlaneseq
          %v666 = vand.u32 %v665, 127
          %vm667 = vcmp.lt.s32.totalorder %v666, 8
          %v668 = vsel %vm667, %v649, -inf
          %v669 = vsel %vm667, %v650, -inf
          %v670 = vsel %vm667, %v651, -inf
          %v671 = vsel %vm667, %v652, -inf
          %v672 = vsel %vm667, %v653, -inf
          %v673 = vsel %vm667, %v654, -inf
          %v674 = vsel %vm667, %v655, -inf
          %v675 = vsel %vm667, %v656, -inf
          %v676 = vsel %vm667, %v657, -inf
          %v677 = vsel %vm667, %v658, -inf
          %v678 = vsel %vm667, %v659, -inf
          %v679 = vsel %vm667, %v660, -inf
          %v680 = vsel %vm667, %v661, -inf
          %v681 = vsel %vm667, %v662, -inf
          %v682 = vsel %vm667, %v663, -inf
          %v683 = vsel %vm667, %v664, -inf
          %684 = vmax.xlane.f32.xlu0 %v668
          %v685 = vpop.xlane.xlu0 %684
          %686 = vmax.xlane.f32.xlu0 %v669
          %v687 = vpop.xlane.xlu0 %686
          %688 = vmax.xlane.f32.xlu0 %v670
          %v689 = vpop.xlane.xlu0 %688
          %690 = vmax.xlane.f32.xlu0 %v671
          %v691 = vpop.xlane.xlu0 %690
          %692 = vmax.xlane.f32.xlu0 %v672
          %v693 = vpop.xlane.xlu0 %692
          %694 = vmax.xlane.f32.xlu0 %v673
          %v695 = vpop.xlane.xlu0 %694
          %696 = vmax.xlane.f32.xlu0 %v674
          %v697 = vpop.xlane.xlu0 %696
          %698 = vmax.xlane.f32.xlu0 %v675
          %v699 = vpop.xlane.xlu0 %698
          %700 = vmax.xlane.f32.xlu0 %v676
          %v701 = vpop.xlane.xlu0 %700
          %702 = vmax.xlane.f32.xlu0 %v677
          %v703 = vpop.xlane.xlu0 %702
          %704 = vmax.xlane.f32.xlu0 %v678
          %v705 = vpop.xlane.xlu0 %704
          %706 = vmax.xlane.f32.xlu0 %v679
          %v707 = vpop.xlane.xlu0 %706
          %708 = vmax.xlane.f32.xlu0 %v680
          %v709 = vpop.xlane.xlu0 %708
          %710 = vmax.xlane.f32.xlu0 %v681
          %v711 = vpop.xlane.xlu0 %710
          %712 = vmax.xlane.f32.xlu0 %v682
          %v713 = vpop.xlane.xlu0 %712
          %714 = vmax.xlane.f32.xlu0 %v683
          %v715 = vpop.xlane.xlu0 %714
          %v716 = vsub.f32 %v649, %v685
          %v717 = vsub.f32 %v650, %v687
          %v718 = vsub.f32 %v651, %v689
          %v719 = vsub.f32 %v652, %v691
          %v720 = vsub.f32 %v653, %v693
          %v721 = vsub.f32 %v654, %v695
          %v722 = vsub.f32 %v655, %v697
          %v723 = vsub.f32 %v656, %v699
          %v724 = vsub.f32 %v657, %v701
          %v725 = vsub.f32 %v658, %v703
          %v726 = vsub.f32 %v659, %v705
          %v727 = vsub.f32 %v660, %v707
          %v728 = vsub.f32 %v661, %v709
          %v729 = vsub.f32 %v662, %v711
          %v730 = vsub.f32 %v663, %v713
          %v731 = vsub.f32 %v664, %v715
          %v732 = vmul.f32 %v716, 1.442695
          %v733 = vpow.pop %v732
          %v734 = vmul.f32 %v717, 1.442695
          %v735 = vpow.pop %v734
          %v736 = vmul.f32 %v718, 1.442695
          %v737 = vpow.pop %v736
          %v738 = vmul.f32 %v719, 1.442695
          %v739 = vpow.pop %v738
          %v740 = vmul.f32 %v720, 1.442695
          %v741 = vpow.pop %v740
          %v742 = vmul.f32 %v721, 1.442695
          %v743 = vpow.pop %v742
          %v744 = vmul.f32 %v722, 1.442695
          %v745 = vpow.pop %v744
          %v746 = vmul.f32 %v723, 1.442695
          %v747 = vpow.pop %v746
          %v748 = vmul.f32 %v724, 1.442695
          %v749 = vpow.pop %v748
          %v750 = vmul.f32 %v725, 1.442695
          %v751 = vpow.pop %v750
          %v752 = vmul.f32 %v726, 1.442695
          %v753 = vpow.pop %v752
          %v754 = vmul.f32 %v727, 1.442695
          %v755 = vpow.pop %v754
          %v756 = vmul.f32 %v728, 1.442695
          %v757 = vpow.pop %v756
          %v758 = vmul.f32 %v729, 1.442695
          %v759 = vpow.pop %v758
          %v760 = vmul.f32 %v730, 1.442695
          %v761 = vpow.pop %v760
          %v762 = vmul.f32 %v731, 1.442695
          %v763 = vpow.pop %v762
          %v764 = vsel %vm667, %v733, 0.0
          %v765 = vsel %vm667, %v735, 0.0
          %v766 = vsel %vm667, %v737, 0.0
          %v767 = vsel %vm667, %v739, 0.0
          %v768 = vsel %vm667, %v741, 0.0
          %v769 = vsel %vm667, %v743, 0.0
          %v770 = vsel %vm667, %v745, 0.0
          %v771 = vsel %vm667, %v747, 0.0
          %v772 = vsel %vm667, %v749, 0.0
          %v773 = vsel %vm667, %v751, 0.0
          %v774 = vsel %vm667, %v753, 0.0
          %v775 = vsel %vm667, %v755, 0.0
          %v776 = vsel %vm667, %v757, 0.0
          %v777 = vsel %vm667, %v759, 0.0
          %v778 = vsel %vm667, %v761, 0.0
          %v779 = vsel %vm667, %v763, 0.0
          %780 = vadd.xlane.f32.xlu0 %v764
          %v781 = vpop.xlane.xlu0 %780
          %782 = vadd.xlane.f32.xlu0 %v765
          %v783 = vpop.xlane.xlu0 %782
          %784 = vadd.xlane.f32.xlu0 %v766
          %v785 = vpop.xlane.xlu0 %784
          %786 = vadd.xlane.f32.xlu0 %v767
          %v787 = vpop.xlane.xlu0 %786
          %788 = vadd.xlane.f32.xlu0 %v768
          %v789 = vpop.xlane.xlu0 %788
          %790 = vadd.xlane.f32.xlu0 %v769
          %v791 = vpop.xlane.xlu0 %790
          %792 = vadd.xlane.f32.xlu0 %v770
          %v793 = vpop.xlane.xlu0 %792
          %794 = vadd.xlane.f32.xlu0 %v771
          %v795 = vpop.xlane.xlu0 %794
          %796 = vadd.xlane.f32.xlu0 %v772
          %v797 = vpop.xlane.xlu0 %796
          %798 = vadd.xlane.f32.xlu0 %v773
          %v799 = vpop.xlane.xlu0 %798
          %800 = vadd.xlane.f32.xlu0 %v774
          %v801 = vpop.xlane.xlu0 %800
          %802 = vadd.xlane.f32.xlu0 %v775
          %v803 = vpop.xlane.xlu0 %802
          %804 = vadd.xlane.f32.xlu0 %v776
          %v805 = vpop.xlane.xlu0 %804
          %806 = vadd.xlane.f32.xlu0 %v777
          %v807 = vpop.xlane.xlu0 %806
          %808 = vadd.xlane.f32.xlu0 %v778
          %v809 = vpop.xlane.xlu0 %808
          %810 = vadd.xlane.f32.xlu0 %v779
          %v811 = vpop.xlane.xlu0 %810
          %v812 = vlog2.pop %v781
          %v813 = vmul.f32 %v812, 0.6931472
          %v814 = vlog2.pop %v783
          %v815 = vmul.f32 %v814, 0.6931472
          %v816 = vlog2.pop %v785
          %v817 = vmul.f32 %v816, 0.6931472
          %v818 = vlog2.pop %v787
          %v819 = vmul.f32 %v818, 0.6931472
          %v820 = vlog2.pop %v789
          %v821 = vmul.f32 %v820, 0.6931472
          %v822 = vlog2.pop %v791
          %v823 = vmul.f32 %v822, 0.6931472
          %v824 = vlog2.pop %v793
          %v825 = vmul.f32 %v824, 0.6931472
          %v826 = vlog2.pop %v795
          %v827 = vmul.f32 %v826, 0.6931472
          %v828 = vlog2.pop %v797
          %v829 = vmul.f32 %v828, 0.6931472
          %v830 = vlog2.pop %v799
          %v831 = vmul.f32 %v830, 0.6931472
          %v832 = vlog2.pop %v801
          %v833 = vmul.f32 %v832, 0.6931472
          %v834 = vlog2.pop %v803
          %v835 = vmul.f32 %v834, 0.6931472
          %v836 = vlog2.pop %v805
          %v837 = vmul.f32 %v836, 0.6931472
          %v838 = vlog2.pop %v807
          %v839 = vmul.f32 %v838, 0.6931472
          %v840 = vlog2.pop %v809
          %v841 = vmul.f32 %v840, 0.6931472
          %v842 = vlog2.pop %v811
          %v843 = vmul.f32 %v842, 0.6931472
          %v844 = vadd.f32 %v685, %v813
          %v845 = vadd.f32 %v687, %v815
          %v846 = vadd.f32 %v689, %v817
          %v847 = vadd.f32 %v691, %v819
          %v848 = vadd.f32 %v693, %v821
          %v849 = vadd.f32 %v695, %v823
          %v850 = vadd.f32 %v697, %v825
          %v851 = vadd.f32 %v699, %v827
          %v852 = vadd.f32 %v701, %v829
          %v853 = vadd.f32 %v703, %v831
          %v854 = vadd.f32 %v705, %v833
          %v855 = vadd.f32 %v707, %v835
          %v856 = vadd.f32 %v709, %v837
          %v857 = vadd.f32 %v711, %v839
          %v858 = vadd.f32 %v713, %v841
          %v859 = vadd.f32 %v715, %v843
          %v860 = vsub.f32 %v649, %v844
          %v861 = vsub.f32 %v650, %v845
          %v862 = vsub.f32 %v651, %v846
          %v863 = vsub.f32 %v652, %v847
          %v864 = vsub.f32 %v653, %v848
          %v865 = vsub.f32 %v654, %v849
          %v866 = vsub.f32 %v655, %v850
          %v867 = vsub.f32 %v656, %v851
          %v868 = vsub.f32 %v657, %v852
          %v869 = vsub.f32 %v658, %v853
          %v870 = vsub.f32 %v659, %v854
          %v871 = vsub.f32 %v660, %v855
          %v872 = vsub.f32 %v661, %v856
          %v873 = vsub.f32 %v662, %v857
          %v874 = vsub.f32 %v663, %v858
          %v875 = vsub.f32 %v664, %v859
          %876 = vst [vmem:[%s333] sm:$0xff] %v860
          %877 = vst [vmem:[%s333 + $0x8] sm:$0xff] %v861
          %878 = vst [vmem:[%s333 + $0x10] sm:$0xff] %v862
          %879 = vst [vmem:[%s333 + $0x18] sm:$0xff] %v863
          %880 = vst [vmem:[%s333 + $0x20] sm:$0xff] %v864
          %881 = vst [vmem:[%s333 + $0x28] sm:$0xff] %v865
          %882 = vst [vmem:[%s333 + $0x30] sm:$0xff] %v866
          %883 = vst [vmem:[%s333 + $0x38] sm:$0xff] %v867
          %884 = vst [vmem:[%s333 + $0x40] sm:$0xff] %v868
          %885 = vst [vmem:[%s333 + $0x48] sm:$0xff] %v869
          %886 = vst [vmem:[%s333 + $0x50] sm:$0xff] %v870
          %887 = vst [vmem:[%s333 + $0x58] sm:$0xff] %v871
          %888 = vst [vmem:[%s333 + $0x60] sm:$0xff] %v872
          %889 = vst [vmem:[%s333 + $0x68] sm:$0xff] %v873
          %890 = vst [vmem:[%s333 + $0x70] sm:$0xff] %v874
          %891 = vst [vmem:[%s333 + $0x78] sm:$0xff] %v875
        $region81: #{graphsage_forward.11} parent=68 // pred_fallthru
          _
        %s892 = smul.u32 16, %s18
        %p893 = scmp.lt.s32.totalorder %s892, 31
        %s894 = scalar_select %p893, %s892, 31
        %s895 = smul.addr %s894, 8
        %s896 = scalar_lea.vmem %s3, %s895
        // Predicated region
        $region82: #{graphsage_forward.11} parent=68 // pred_check
          %p897 = pneg %p124
        $region83: #{graphsage_forward.11} parent=68 // pred_check_branch
          %899 = sbr.rel (%p897) target = $region85
        $region84: #{graphsage_forward.11} parent=68 // pred_region
          %s900 = smul.u32 16, %s18
        $region85: #{graphsage_forward.11} parent=68 // pred_fallthru
          _
      $region69: #{graphsage_forward.11} parent=5 // pred_fallthru
        _
      %p901 = scmp.le.s32.totalorder 2, %s9
      // Predicated region
      $region86: #{graphsage_forward.11} parent=5 // pred_check
        %p902 = pneg %p901
      $region87: #{graphsage_forward.11} parent=5 // pred_check_branch
        %904 = sbr.rel (%p902) target = $region89
      $region88: #{graphsage_forward.11} parent=5 // pred_region
        %s905 = ssub.s32 %s9, 2
        // Predicated region
        $region90: #{graphsage_forward.11} parent=88 // pred_check
          %p906 = pneg %p130
        $region91: #{graphsage_forward.11} parent=88 // pred_check_branch
          %908 = sbr.rel (%p906) target = $region93
        $region92: #{graphsage_forward.11} parent=88 // pred_region
          %s909 = smul.u32 16, %s20
          %p910 = scmp.lt.s32.totalorder %s909, 31
          %s911 = scalar_select %p910, %s909, 31
          %s912 = smul.addr %s911, 8
          %s913 = scalar_lea.vmem %s3, %s912
        $region93: #{graphsage_forward.11} parent=88 // pred_fallthru
          _
      $region89: #{graphsage_forward.11} parent=5 // pred_fallthru
        _
    $region6: #{graphsage_forward.11} parent=1 // loop_footer
      %s13 = sadd.s32 1, %s9
    $region7: #{graphsage_forward.11} parent=1 // loop_footer_branch
      %8 = sbr.rel target = $region3
    $region8: #{graphsage_forward.11} parent=1 // loop_exit
      _

</llo_original>
